<compile_context>
chip_gen: v7x
topology: tpu7x:2x2x1
jax: 0.10.0
libtpu: 0.0.40
codegen_flags: <defaults>
</compile_context>

<pallas_src>
import functools

import jax
import jax.numpy as jnp
from jax.experimental import pallas as pl
from jax.experimental.pallas import tpu as pltpu


def _round_up(x, m):
    return (x + m - 1) // m * m


def _ano_head_kernel(x_ref, w1_ref, w2_ref, o_ref):
    # x_ref : (TB, 1024)    bf16 batch tile
    # w1_ref: (1024, 512)   bf16 fc_1 weight (in, out) -- VMEM-resident
    # w2_ref: (512, OUTP)   bf16 fc_2 weight (in, out_padded) -- VMEM-resident
    # o_ref : (TB, OUTP)    f32 output tile (OUTP % 128 == 0 -> lane-dense)
    h = jnp.dot(x_ref[...], w1_ref[...], preferred_element_type=jnp.float32)
    h = jnp.maximum(h, 0.0)                                    # ReLU in f32
    z = jnp.dot(h.astype(w2_ref.dtype), w2_ref[...],
                preferred_element_type=jnp.float32)
    o_ref[...] = jax.nn.sigmoid(z).astype(o_ref.dtype)         # Sigmoid in f32


def _vmem_limit_bytes(block_b, d_in, d_hid, d_out_pad):
    # Double-buffered bf16 x tile + bf16 weights + f32 out tile, 2x headroom.
    # Stays well under every generation's physical VMEM (v7x: 64 MiB per TC).
    need = 2 * (block_b * d_in * 2 + d_in * d_hid * 2 +
                d_hid * d_out_pad * 2 + block_b * d_out_pad * 4)
    return min(2 * need + (8 << 20), 32 << 20)


@functools.partial(jax.jit, static_argnames=("block_b",))
def ano_regression_head_forward(x, fc1_w, fc2_w, *, block_b=512):
    """Forward pass of ano_regression_head.

    x     : (B, 1024) float array.
    fc1_w : (512, 1024) == PyTorch fc_1.weight (out, in), no bias.
    fc2_w : (clip_number*clip_frames, 512) == PyTorch fc_2.weight (out, in).
    Returns (B, clip_number*clip_frames) in x.dtype.
    """
    B, D_in = x.shape
    D_hid, d_in_w = fc1_w.shape
    D_out, d_hid_w = fc2_w.shape
    assert D_in == d_in_w and D_hid == d_hid_w

    # --- lane-dense output: pad out-features to a multiple of 128 -----------
    D_out_pad = _round_up(D_out, 128)

    # --- bf16 operands, (in, out) layout for the MXU ------------------------
    x_bf = x.astype(jnp.bfloat16)
    w1_t = fc1_w.T.astype(jnp.bfloat16)                        # (1024, 512)
    w2_t = fc2_w.T.astype(jnp.bfloat16)                        # (512, D_out)
    if D_out_pad != D_out:
        w2_t = jnp.pad(w2_t, ((0, 0), (0, D_out_pad - D_out)))

    # --- batch tiling: big MXU-friendly tiles + padded ragged tail ----------
    # Blocks are multiples of 128 rows; aim for >= 2 grid steps so v7x's two
    # TensorCores both get work (dimension_semantics=("parallel",)).
    block_eff = min(block_b, max(128, _round_up(pl.cdiv(B, 2), 128)))
    n_blocks = pl.cdiv(B, block_eff)
    B_pad = n_blocks * block_eff
    if B_pad != B:
        x_bf = jnp.pad(x_bf, ((0, B_pad - B), (0, 0)))

    out = pl.pallas_call(
        _ano_head_kernel,
        out_shape=jax.ShapeDtypeStruct((B_pad, D_out_pad), jnp.float32),
        grid_spec=pltpu.PrefetchScalarGridSpec(
            num_scalar_prefetch=0,
            grid=(n_blocks,),
            in_specs=[
                pl.BlockSpec((block_eff, D_in), lambda i: (i, 0)),    # x tile
                pl.BlockSpec((D_in, D_hid), lambda i: (0, 0)),        # W1 resident
                pl.BlockSpec((D_hid, D_out_pad), lambda i: (0, 0)),   # W2 resident
            ],
            out_specs=pl.BlockSpec((block_eff, D_out_pad), lambda i: (i, 0)),
        ),
        compiler_params=pltpu.CompilerParams(
            dimension_semantics=("parallel",),
            vmem_limit_bytes=_vmem_limit_bytes(block_eff, D_in, D_hid, D_out_pad),
        ),
    )(x_bf, w1_t, w2_t)

    # Strip batch / feature padding and restore the caller's dtype.
    return out[:B, :D_out].astype(x.dtype)


if __name__ == "__main__":
    clip_number, clip_frames = 4, 16        # -> 64 output features
    B = 200                                 # deliberately ragged batch

    key = jax.random.PRNGKey(0)
    kx, k1, k2 = jax.random.split(key, 3)
    x = jax.random.normal(kx, (B, 1024), dtype=jnp.float32)
    # torch nn.Linear default-init-like bounds.
    b1 = 1.0 / jnp.sqrt(1024.0)
    b2 = 1.0 / jnp.sqrt(512.0)
    fc1_w = jax.random.uniform(k1, (512, 1024), jnp.float32, minval=-b1, maxval=b1)
    fc2_w = jax.random.uniform(k2, (clip_number * clip_frames, 512), jnp.float32,
                               minval=-b2, maxval=b2)

    out = jax.block_until_ready(ano_regression_head_forward(x, fc1_w, fc2_w))
    assert out.shape == (B, clip_number * clip_frames)

    # Reference 1: same bf16 operand precision as the kernel (tight check).
    xb = x.astype(jnp.bfloat16).astype(jnp.float32)
    w1b = fc1_w.astype(jnp.bfloat16).astype(jnp.float32)
    w2b = fc2_w.astype(jnp.bfloat16).astype(jnp.float32)
    h = jnp.maximum(xb @ w1b.T, 0.0)
    ref_bf16 = jax.nn.sigmoid(h.astype(jnp.bfloat16).astype(jnp.float32) @ w2b.T)
    assert jnp.allclose(out, ref_bf16, atol=1e-2, rtol=1e-2)

    # Reference 2: full-f32 PyTorch math (loose check; bf16 operand rounding).
    ref_f32 = jax.nn.sigmoid(jnp.maximum(x @ fc1_w.T, 0.0) @ fc2_w.T)
    assert jnp.allclose(out, ref_f32, atol=3e-2, rtol=3e-2)

    print("KERNEL_OK")
</pallas_src>

<mosaic_0001>
module attributes {stable_mosaic.version = 11 : i64} {
  func.func @_ano_head_kernel(%arg0: i32, %arg1: memref<128x1024xbf16, #tpu.memory_space<vmem>>, %arg2: memref<1024x512xbf16, #tpu.memory_space<vmem>>, %arg3: memref<512x128xbf16, #tpu.memory_space<vmem>>, %arg4: memref<128x128xf32, #tpu.memory_space<vmem>>) attributes {dimension_semantics = [#tpu.dimension_semantics<parallel>], iteration_bounds = array<i64: 2>, scalar_prefetch = 0 : i64, scratch_operands = 0 : i64, tpu.core_type = #tpu.core_type<tc>, window_params = [{transform_indices = @transform_0, window_bounds = array<i64: 128, 1024>}, {pipeline_mode = #tpu.pipeline_mode<synchronous>, transform_indices = @transform_1, window_bounds = array<i64: 1024, 512>}, {pipeline_mode = #tpu.pipeline_mode<synchronous>, transform_indices = @transform_2, window_bounds = array<i64: 512, 128>}, {transform_indices = @transform_3, window_bounds = array<i64: 128, 128>}]} {
    %c0 = arith.constant 0 : index
    %c0_0 = arith.constant 0 : index
    %0 = vector.load %arg1[%c0, %c0_0] : memref<128x1024xbf16, #tpu.memory_space<vmem>>, vector<128x1024xbf16>
    %c0_1 = arith.constant 0 : index
    %c0_2 = arith.constant 0 : index
    %1 = vector.load %arg2[%c0_1, %c0_2] : memref<1024x512xbf16, #tpu.memory_space<vmem>>, vector<1024x512xbf16>
    %cst = arith.constant dense<0.000000e+00> : vector<128x512xf32>
    %2 = tpu.matmul %0, %1, %cst {dimension_numbers = #tpu.dot_dimension_numbers<[1], [0], [0], [1], [0, 0, 1, 1], [], []>} : vector<128x1024xbf16>, vector<1024x512xbf16>, vector<128x512xf32> -> vector<128x512xf32>
    %cst_3 = arith.constant 0.000000e+00 : f32
    %3 = vector.broadcast %cst_3 : f32 to vector<128x512xf32>
    %4 = arith.maximumf %2, %3 : vector<128x512xf32>
    %5 = arith.truncf %4 : vector<128x512xf32> to vector<128x512xbf16>
    %c0_4 = arith.constant 0 : index
    %c0_5 = arith.constant 0 : index
    %6 = vector.load %arg3[%c0_4, %c0_5] : memref<512x128xbf16, #tpu.memory_space<vmem>>, vector<512x128xbf16>
    %cst_6 = arith.constant dense<0.000000e+00> : vector<128x128xf32>
    %7 = tpu.matmul %5, %6, %cst_6 {dimension_numbers = #tpu.dot_dimension_numbers<[1], [0], [0], [1], [0, 0, 1, 1], [], []>} : vector<128x512xbf16>, vector<512x128xbf16>, vector<128x128xf32> -> vector<128x128xf32>
    %8 = arith.negf %7 : vector<128x128xf32>
    %9 = math.exp %8 : vector<128x128xf32>
    %cst_7 = arith.constant 1.000000e+00 : f32
    %10 = vector.broadcast %cst_7 : f32 to vector<128x128xf32>
    %11 = arith.addf %10, %9 : vector<128x128xf32>
    %12 = arith.divf %10, %11 : vector<128x128xf32>
    %c0_8 = arith.constant 0 : index
    %c0_9 = arith.constant 0 : index
    %13 = vector.load %arg4[%c0_8, %c0_9] : memref<128x128xf32, #tpu.memory_space<vmem>>, vector<128x128xf32>
    tpu.vector_store %arg4[%c0_8, %c0_9], %12 {strides = array<i32>} : memref<128x128xf32, #tpu.memory_space<vmem>>, vector<128x128xf32>,
    return
  }
  func.func @transform_0(%arg0: i32) -> (i32, i32) {
    %c0_i32 = arith.constant 0 : i32
    %c0_i32_0 = arith.constant 0 : i32
    return %arg0, %c0_i32 : i32, i32
  }
  func.func @transform_1(%arg0: i32) -> (i32, i32) {
    %c0_i32 = arith.constant 0 : i32
    %c0_i32_0 = arith.constant 0 : i32
    %c0_i32_1 = arith.constant 0 : i32
    return %c0_i32, %c0_i32_0 : i32, i32
  }
  func.func @transform_2(%arg0: i32) -> (i32, i32) {
    %c0_i32 = arith.constant 0 : i32
    %c0_i32_0 = arith.constant 0 : i32
    %c0_i32_1 = arith.constant 0 : i32
    return %c0_i32, %c0_i32_0 : i32, i32
  }
  func.func @transform_3(%arg0: i32) -> (i32, i32) {
    %c0_i32 = arith.constant 0 : i32
    %c0_i32_0 = arith.constant 0 : i32
    return %arg0, %c0_i32 : i32, i32
  }
}

</mosaic_0001>

<llo_original>
// kernel: ano_regression_head_forward.1
$region0: #{ano_regression_head_forward.1}
  #allocation0 [shape = 'u32[]', space=smem, size = 0x4, offset = 0x4, fixed_abs, tag = 'smem constant byte address 0x4 - core index']
  #allocation1 [shape = 'u32[144,128]{1,0:T(1,128)}', space=vmem, size = 0x12000, scoped, tag = 'internal scratch']
  %s0 = inlined_call_operand.vmem [shape: bf16[256,1024], index: 0, kind: input, shape index: {}]
  %s1 = inlined_call_operand.vmem [shape: bf16[1024,512], index: 1, kind: input, shape index: {}]
  %s2 = inlined_call_operand.vmem [shape: bf16[512,128], index: 2, kind: input, shape index: {}]
  %s3 = inlined_call_operand.vmem [shape: f32[256,128], index: 3, kind: output, shape index: {}]
  %s4 = sld [smem:[#allocation0]]
  $region45: #{ano_regression_head_forward.1} parent=0
    _
  %s6 = ssub.s32 1, %s4
  %s7 = scalar_select 0, %s6, %s4
  loop: start=0, step=1, limit=4
  $region2: #{ano_regression_head_forward.1} parent=0 // loop_pre_header
    _
  $region3: #{ano_regression_head_forward.1} parent=0 // loop_header
    %s9 = sphi 0, %s13
    %p10 = scmp.ge.s32.totalorder %s9, 4
    %s19 = sphi 0, %s21
    %s22 = sphi 0, %s19
    %s23 = sphi 0, %s22
    %s39 = sphi 0, %s23
    %s43 = sphi 0, %s43
    %s45 = sphi 0, %s43
    %s46 = sphi 0, %s45
    %s60 = sphi 0, %s46
    %s64 = sphi 0, %s64
    %s66 = sphi 0, %s64
    %s67 = sphi 0, %s66
    %s81 = sphi 0, %s67
    %s87 = sphi 0, %s89
    %s90 = sphi 0, %s87
    %s91 = sphi 0, %s90
    %s107 = sphi 0, %s91
  $region4: #{ano_regression_head_forward.1} parent=0 // loop_header_branch
    %12 = sbr.rel (%p10) target = $region8
  $region5: #{ano_regression_head_forward.1} parent=0 // loop_body
    %s14 = ssub.s32 %s9, 1
    %s15 = ssub.s32 %s9, 2
    %s16 = sadd.s32 %s9, 1
    %s17 = ssub.s32 %s9, %s16
    %p18 = scmp.eq.s32.totalorder %s17, 0
    %s20 = sadd.s32 %s19, 1
    %s21 = scalar_select %p18, %s19, %s20
    %p24 = pneg %p18
    %p25 = scmp.eq.s32.totalorder %s9, 1
    %p26 = por %p24, %p25
    %p27 = scmp.ne.s32.totalorder %s19, %s22
    %p28 = scmp.eq.s32.totalorder %s9, 0
    %p29 = por %p27, %p28
    %p30 = scmp.ne.s32.totalorder %s19, %s22
    %p31 = scmp.eq.s32.totalorder %s14, 1
    %p32 = por %p30, %p31
    %p33 = scmp.ne.s32.totalorder %s22, %s23
    %p34 = scmp.eq.s32.totalorder %s14, 0
    %p35 = por %p33, %p34
    %p36 = scmp.ne.s32.totalorder %s22, %s23
    %p37 = scmp.eq.s32.totalorder %s15, 1
    %p38 = por %p36, %p37
    %p40 = scmp.ne.s32.totalorder %s23, %s39
    %p41 = scmp.eq.s32.totalorder %s15, 0
    %p42 = por %p40, %p41
    %s44 = sadd.s32 %s43, 1
    %p47 = scmp.eq.s32.totalorder %s9, 1
    %p48 = scmp.ne.s32.totalorder %s43, %s45
    %p49 = scmp.eq.s32.totalorder %s9, 0
    %p50 = por %p48, %p49
    %p51 = scmp.ne.s32.totalorder %s43, %s45
    %p52 = scmp.eq.s32.totalorder %s14, 1
    %p53 = por %p51, %p52
    %p54 = scmp.ne.s32.totalorder %s45, %s46
    %p55 = scmp.eq.s32.totalorder %s14, 0
    %p56 = por %p54, %p55
    %p57 = scmp.ne.s32.totalorder %s45, %s46
    %p58 = scmp.eq.s32.totalorder %s15, 1
    %p59 = por %p57, %p58
    %p61 = scmp.ne.s32.totalorder %s46, %s60
    %p62 = scmp.eq.s32.totalorder %s15, 0
    %p63 = por %p61, %p62
    %s65 = sadd.s32 %s64, 1
    %p68 = scmp.eq.s32.totalorder %s9, 1
    %p69 = scmp.ne.s32.totalorder %s64, %s66
    %p70 = scmp.eq.s32.totalorder %s9, 0
    %p71 = por %p69, %p70
    %p72 = scmp.ne.s32.totalorder %s64, %s66
    %p73 = scmp.eq.s32.totalorder %s14, 1
    %p74 = por %p72, %p73
    %p75 = scmp.ne.s32.totalorder %s66, %s67
    %p76 = scmp.eq.s32.totalorder %s14, 0
    %p77 = por %p75, %p76
    %p78 = scmp.ne.s32.totalorder %s66, %s67
    %p79 = scmp.eq.s32.totalorder %s15, 1
    %p80 = por %p78, %p79
    %p82 = scmp.ne.s32.totalorder %s67, %s81
    %p83 = scmp.eq.s32.totalorder %s15, 0
    %p84 = por %p82, %p83
    %s85 = ssub.s32 %s9, %s16
    %p86 = scmp.eq.s32.totalorder %s85, 0
    %s88 = sadd.s32 %s87, 1
    %s89 = scalar_select %p86, %s87, %s88
    %p92 = pneg %p86
    %p93 = scmp.eq.s32.totalorder %s9, 1
    %p94 = por %p92, %p93
    %p95 = scmp.ne.s32.totalorder %s87, %s90
    %p96 = scmp.eq.s32.totalorder %s9, 0
    %p97 = por %p95, %p96
    %p98 = scmp.ne.s32.totalorder %s87, %s90
    %p99 = scmp.eq.s32.totalorder %s14, 1
    %p100 = por %p98, %p99
    %p101 = scmp.ne.s32.totalorder %s90, %s91
    %p102 = scmp.eq.s32.totalorder %s14, 0
    %p103 = por %p101, %p102
    %p104 = scmp.ne.s32.totalorder %s90, %s91
    %p105 = scmp.eq.s32.totalorder %s15, 1
    %p106 = por %p104, %p105
    %p108 = scmp.ne.s32.totalorder %s91, %s107
    %p109 = scmp.eq.s32.totalorder %s15, 0
    %p110 = por %p108, %p109
    %p111 = scmp.le.s32.totalorder 1, %s9
    %p112 = scmp.lt.s32.totalorder %s9, 3
    %p113 = pnand %p111, %p112
    %p114 = pneg %p113
    // Predicated region
    $region9: #{ano_regression_head_forward.1} parent=5 // pred_check
      _
    $region10: #{ano_regression_head_forward.1} parent=5 // pred_check_branch
      %116 = sbr.rel (%p113) target = $region12
    $region11: #{ano_regression_head_forward.1} parent=5 // pred_region
      %s117 = ssub.s32 %s9, 1
      // Predicated region
      $region13: #{ano_regression_head_forward.1} parent=11 // pred_check
        %p118 = pneg %p56
      $region14: #{ano_regression_head_forward.1} parent=11 // pred_check_branch
        %120 = sbr.rel (%p118) target = $region16
      $region15: #{ano_regression_head_forward.1} parent=11 // pred_region
        _
      $region16: #{ano_regression_head_forward.1} parent=11 // pred_fallthru
        _
      // Predicated region
      $region17: #{ano_regression_head_forward.1} parent=11 // pred_check
        %p121 = pneg %p77
      $region18: #{ano_regression_head_forward.1} parent=11 // pred_check_branch
        %123 = sbr.rel (%p121) target = $region20
      $region19: #{ano_regression_head_forward.1} parent=11 // pred_region
        _
      $region20: #{ano_regression_head_forward.1} parent=11 // pred_fallthru
        _
    $region12: #{ano_regression_head_forward.1} parent=5 // pred_fallthru
      _
    %p124 = scmp.lt.s32.totalorder %s9, 2
    // Predicated region
    $region21: #{ano_regression_head_forward.1} parent=5 // pred_check
      %p125 = pneg %p124
    $region22: #{ano_regression_head_forward.1} parent=5 // pred_check_branch
      %127 = sbr.rel (%p125) target = $region24
    $region23: #{ano_regression_head_forward.1} parent=5 // pred_region
      // Predicated region
      $region25: #{ano_regression_head_forward.1} parent=23 // pred_check
        %p128 = pneg %p29
      $region26: #{ano_regression_head_forward.1} parent=23 // pred_check_branch
        %130 = sbr.rel (%p128) target = $region28
      $region27: #{ano_regression_head_forward.1} parent=23 // pred_region
        %s131 = smul.u32 16, %s9
        %p132 = scmp.lt.s32.totalorder %s131, 31
        %s133 = scalar_select %p132, %s131, 31
        %s134 = smul.addr %s133, 8
        %s135 = smul.addr %s134, 4
        %s136 = scalar_lea.vmem %s0, %s135
        %s137 = smul.u32 16, %s9
      $region28: #{ano_regression_head_forward.1} parent=23 // pred_fallthru
        _
    $region24: #{ano_regression_head_forward.1} parent=5 // pred_fallthru
      _
    %p138 = scmp.le.s32.totalorder 1, %s9
    %p139 = scmp.lt.s32.totalorder %s9, 3
    %p140 = pnand %p138, %p139
    %p141 = pneg %p140
    // Predicated region
    $region29: #{ano_regression_head_forward.1} parent=5 // pred_check
      _
    $region30: #{ano_regression_head_forward.1} parent=5 // pred_check_branch
      %143 = sbr.rel (%p140) target = $region32
    $region31: #{ano_regression_head_forward.1} parent=5 // pred_region
      %s144 = ssub.s32 %s9, 1
      %s145 = smul.u32 16, %s14
      %p146 = scmp.lt.s32.totalorder %s145, 31
      %s147 = scalar_select %p146, %s145, 31
      %s148 = smul.addr %s147, 8
      %s149 = smul.addr %s148, 4
      %s150 = scalar_lea.vmem %s0, %s149
      %p151 = pneg %p35
      %p152 = pneg %p32
      %p153 = pneg %p56
      %p154 = pneg %p53
      %p155 = pneg %p77
      %p156 = pneg %p74
      %p157 = pneg %p103
      %p158 = pneg %p100
      %s159 = smul.u32 16, %s14
      %p160 = scmp.lt.s32.totalorder %s159, 31
      %s161 = scalar_select %p160, %s159, 31
      %s162 = smul.addr %s161, 8
      %s163 = scalar_lea.vmem %s3, %s162
      %s164 = smul.u32 16, %s14
      %p165 = scmp.lt.s32.totalorder %s164, 31
      %s166 = scalar_select %p165, %s164, 31
      %s167 = smul.addr %s166, 8
      %s168 = smul.addr %s167, 4
      %s169 = scalar_lea.vmem %s0, %s168
      %s170 = smul.u32 16, %s14
      %s171 = smul.u32 16, %s14
      %p172 = scmp.lt.s32.totalorder %s171, 31
      %s173 = scalar_select %p172, %s171, 31
      %s174 = smul.addr %s173, 8
      %s175 = scalar_lea.vmem %s3, %s174
      %s176 = smul.u32 16, %s14
      %v178 = vld [vmem:[%s169] sm:$0xff]
      %v179 = vld [vmem:[%s169 + $0x8] sm:$0xff]
      %v180 = vld [vmem:[%s169 + $0x10] sm:$0xff]
      %v181 = vld [vmem:[%s169 + $0x18] sm:$0xff]
      %v182 = vld [vmem:[%s169 + $0x20] sm:$0xff]
      %v183 = vld [vmem:[%s169 + $0x28] sm:$0xff]
      %v184 = vld [vmem:[%s169 + $0x30] sm:$0xff]
      %v185 = vld [vmem:[%s169 + $0x38] sm:$0xff]
      %v186 = vld [vmem:[%s169 + $0x40] sm:$0xff]
      %v187 = vld [vmem:[%s169 + $0x48] sm:$0xff]
      %v188 = vld [vmem:[%s169 + $0x50] sm:$0xff]
      %v189 = vld [vmem:[%s169 + $0x58] sm:$0xff]
      %v190 = vld [vmem:[%s169 + $0x60] sm:$0xff]
      %v191 = vld [vmem:[%s169 + $0x68] sm:$0xff]
      %v192 = vld [vmem:[%s169 + $0x70] sm:$0xff]
      %v193 = vld [vmem:[%s169 + $0x78] sm:$0xff]
      %v194 = vld [vmem:[%s169 + $0x80] sm:$0xff]
      %v195 = vld [vmem:[%s169 + $0x88] sm:$0xff]
      %v196 = vld [vmem:[%s169 + $0x90] sm:$0xff]
      %v197 = vld [vmem:[%s169 + $0x98] sm:$0xff]
      %v198 = vld [vmem:[%s169 + $0xa0] sm:$0xff]
      %v199 = vld [vmem:[%s169 + $0xa8] sm:$0xff]
      %v200 = vld [vmem:[%s169 + $0xb0] sm:$0xff]
      %v201 = vld [vmem:[%s169 + $0xb8] sm:$0xff]
      %v202 = vld [vmem:[%s169 + $0xc0] sm:$0xff]
      %v203 = vld [vmem:[%s169 + $0xc8] sm:$0xff]
      %v204 = vld [vmem:[%s169 + $0xd0] sm:$0xff]
      %v205 = vld [vmem:[%s169 + $0xd8] sm:$0xff]
      %v206 = vld [vmem:[%s169 + $0xe0] sm:$0xff]
      %v207 = vld [vmem:[%s169 + $0xe8] sm:$0xff]
      %v208 = vld [vmem:[%s169 + $0xf0] sm:$0xff]
      %v209 = vld [vmem:[%s169 + $0xf8] sm:$0xff]
      %v210 = vld [vmem:[%s169 + $0x100] sm:$0xff]
      %v211 = vld [vmem:[%s169 + $0x108] sm:$0xff]
      %v212 = vld [vmem:[%s169 + $0x110] sm:$0xff]
      %v213 = vld [vmem:[%s169 + $0x118] sm:$0xff]
      %v214 = vld [vmem:[%s169 + $0x120] sm:$0xff]
      %v215 = vld [vmem:[%s169 + $0x128] sm:$0xff]
      %v216 = vld [vmem:[%s169 + $0x130] sm:$0xff]
      %v217 = vld [vmem:[%s169 + $0x138] sm:$0xff]
      %v218 = vld [vmem:[%s169 + $0x140] sm:$0xff]
      %v219 = vld [vmem:[%s169 + $0x148] sm:$0xff]
      %v220 = vld [vmem:[%s169 + $0x150] sm:$0xff]
      %v221 = vld [vmem:[%s169 + $0x158] sm:$0xff]
      %v222 = vld [vmem:[%s169 + $0x160] sm:$0xff]
      %v223 = vld [vmem:[%s169 + $0x168] sm:$0xff]
      %v224 = vld [vmem:[%s169 + $0x170] sm:$0xff]
      %v225 = vld [vmem:[%s169 + $0x178] sm:$0xff]
      %v226 = vld [vmem:[%s169 + $0x180] sm:$0xff]
      %v227 = vld [vmem:[%s169 + $0x188] sm:$0xff]
      %v228 = vld [vmem:[%s169 + $0x190] sm:$0xff]
      %v229 = vld [vmem:[%s169 + $0x198] sm:$0xff]
      %v230 = vld [vmem:[%s169 + $0x1a0] sm:$0xff]
      %v231 = vld [vmem:[%s169 + $0x1a8] sm:$0xff]
      %v232 = vld [vmem:[%s169 + $0x1b0] sm:$0xff]
      %v233 = vld [vmem:[%s169 + $0x1b8] sm:$0xff]
      %v234 = vld [vmem:[%s169 + $0x1c0] sm:$0xff]
      %v235 = vld [vmem:[%s169 + $0x1c8] sm:$0xff]
      %v236 = vld [vmem:[%s169 + $0x1d0] sm:$0xff]
      %v237 = vld [vmem:[%s169 + $0x1d8] sm:$0xff]
      %v238 = vld [vmem:[%s169 + $0x1e0] sm:$0xff]
      %v239 = vld [vmem:[%s169 + $0x1e8] sm:$0xff]
      %v240 = vld [vmem:[%s169 + $0x1f0] sm:$0xff]
      %v241 = vld [vmem:[%s169 + $0x1f8] sm:$0xff]
      %v242 = vld [vmem:[%s1] sm:$0xff]
      %v243 = vld [vmem:[%s1 + $0x8] sm:$0xff]
      %v244 = vld [vmem:[%s1 + $0x10] sm:$0xff]
      %v245 = vld [vmem:[%s1 + $0x18] sm:$0xff]
      %v246 = vld [vmem:[%s1 + $0x20] sm:$0xff]
      %v247 = vld [vmem:[%s1 + $0x28] sm:$0xff]
      %v248 = vld [vmem:[%s1 + $0x30] sm:$0xff]
      %v249 = vld [vmem:[%s1 + $0x38] sm:$0xff]
      %v250 = vld [vmem:[%s1 + $0x40] sm:$0xff]
      %v251 = vld [vmem:[%s1 + $0x48] sm:$0xff]
      %v252 = vld [vmem:[%s1 + $0x50] sm:$0xff]
      %v253 = vld [vmem:[%s1 + $0x58] sm:$0xff]
      %v254 = vld [vmem:[%s1 + $0x60] sm:$0xff]
      %v255 = vld [vmem:[%s1 + $0x68] sm:$0xff]
      %v256 = vld [vmem:[%s1 + $0x70] sm:$0xff]
      %v257 = vld [vmem:[%s1 + $0x78] sm:$0xff]
      %v258 = vld [vmem:[%s1 + $0x80] sm:$0xff]
      %v259 = vld [vmem:[%s1 + $0x88] sm:$0xff]
      %v260 = vld [vmem:[%s1 + $0x90] sm:$0xff]
      %v261 = vld [vmem:[%s1 + $0x98] sm:$0xff]
      %v262 = vld [vmem:[%s1 + $0xa0] sm:$0xff]
      %v263 = vld [vmem:[%s1 + $0xa8] sm:$0xff]
      %v264 = vld [vmem:[%s1 + $0xb0] sm:$0xff]
      %v265 = vld [vmem:[%s1 + $0xb8] sm:$0xff]
      %v266 = vld [vmem:[%s1 + $0xc0] sm:$0xff]
      %v267 = vld [vmem:[%s1 + $0xc8] sm:$0xff]
      %v268 = vld [vmem:[%s1 + $0xd0] sm:$0xff]
      %v269 = vld [vmem:[%s1 + $0xd8] sm:$0xff]
      %v270 = vld [vmem:[%s1 + $0xe0] sm:$0xff]
      %v271 = vld [vmem:[%s1 + $0xe8] sm:$0xff]
      %v272 = vld [vmem:[%s1 + $0xf0] sm:$0xff]
      %v273 = vld [vmem:[%s1 + $0xf8] sm:$0xff]
      %v274 = vld [vmem:[%s1 + $0x100] sm:$0xff]
      %v275 = vld [vmem:[%s1 + $0x108] sm:$0xff]
      %v276 = vld [vmem:[%s1 + $0x110] sm:$0xff]
      %v277 = vld [vmem:[%s1 + $0x118] sm:$0xff]
      %v278 = vld [vmem:[%s1 + $0x120] sm:$0xff]
      %v279 = vld [vmem:[%s1 + $0x128] sm:$0xff]
      %v280 = vld [vmem:[%s1 + $0x130] sm:$0xff]
      %v281 = vld [vmem:[%s1 + $0x138] sm:$0xff]
      %v282 = vld [vmem:[%s1 + $0x140] sm:$0xff]
      %v283 = vld [vmem:[%s1 + $0x148] sm:$0xff]
      %v284 = vld [vmem:[%s1 + $0x150] sm:$0xff]
      %v285 = vld [vmem:[%s1 + $0x158] sm:$0xff]
      %v286 = vld [vmem:[%s1 + $0x160] sm:$0xff]
      %v287 = vld [vmem:[%s1 + $0x168] sm:$0xff]
      %v288 = vld [vmem:[%s1 + $0x170] sm:$0xff]
      %v289 = vld [vmem:[%s1 + $0x178] sm:$0xff]
      %v290 = vld [vmem:[%s1 + $0x180] sm:$0xff]
      %v291 = vld [vmem:[%s1 + $0x188] sm:$0xff]
      %v292 = vld [vmem:[%s1 + $0x190] sm:$0xff]
      %v293 = vld [vmem:[%s1 + $0x198] sm:$0xff]
      %v294 = vld [vmem:[%s1 + $0x1a0] sm:$0xff]
      %v295 = vld [vmem:[%s1 + $0x1a8] sm:$0xff]
      %v296 = vld [vmem:[%s1 + $0x1b0] sm:$0xff]
      %v297 = vld [vmem:[%s1 + $0x1b8] sm:$0xff]
      %v298 = vld [vmem:[%s1 + $0x1c0] sm:$0xff]
      %v299 = vld [vmem:[%s1 + $0x1c8] sm:$0xff]
      %v300 = vld [vmem:[%s1 + $0x1d0] sm:$0xff]
      %v301 = vld [vmem:[%s1 + $0x1d8] sm:$0xff]
      %v302 = vld [vmem:[%s1 + $0x1e0] sm:$0xff]
      %v303 = vld [vmem:[%s1 + $0x1e8] sm:$0xff]
      %v304 = vld [vmem:[%s1 + $0x1f0] sm:$0xff]
      %v305 = vld [vmem:[%s1 + $0x1f8] sm:$0xff]
      %v306 = vld [vmem:[%s1 + $0x200] sm:$0xff]
      %v307 = vld [vmem:[%s1 + $0x208] sm:$0xff]
      %v308 = vld [vmem:[%s1 + $0x210] sm:$0xff]
      %v309 = vld [vmem:[%s1 + $0x218] sm:$0xff]
      %v310 = vld [vmem:[%s1 + $0x220] sm:$0xff]
      %v311 = vld [vmem:[%s1 + $0x228] sm:$0xff]
      %v312 = vld [vmem:[%s1 + $0x230] sm:$0xff]
      %v313 = vld [vmem:[%s1 + $0x238] sm:$0xff]
      %v314 = vld [vmem:[%s1 + $0x240] sm:$0xff]
      %v315 = vld [vmem:[%s1 + $0x248] sm:$0xff]
      %v316 = vld [vmem:[%s1 + $0x250] sm:$0xff]
      %v317 = vld [vmem:[%s1 + $0x258] sm:$0xff]
      %v318 = vld [vmem:[%s1 + $0x260] sm:$0xff]
      %v319 = vld [vmem:[%s1 + $0x268] sm:$0xff]
      %v320 = vld [vmem:[%s1 + $0x270] sm:$0xff]
      %v321 = vld [vmem:[%s1 + $0x278] sm:$0xff]
      %v322 = vld [vmem:[%s1 + $0x280] sm:$0xff]
      %v323 = vld [vmem:[%s1 + $0x288] sm:$0xff]
      %v324 = vld [vmem:[%s1 + $0x290] sm:$0xff]
      %v325 = vld [vmem:[%s1 + $0x298] sm:$0xff]
      %v326 = vld [vmem:[%s1 + $0x2a0] sm:$0xff]
      %v327 = vld [vmem:[%s1 + $0x2a8] sm:$0xff]
      %v328 = vld [vmem:[%s1 + $0x2b0] sm:$0xff]
      %v329 = vld [vmem:[%s1 + $0x2b8] sm:$0xff]
      %v330 = vld [vmem:[%s1 + $0x2c0] sm:$0xff]
      %v331 = vld [vmem:[%s1 + $0x2c8] sm:$0xff]
      %v332 = vld [vmem:[%s1 + $0x2d0] sm:$0xff]
      %v333 = vld [vmem:[%s1 + $0x2d8] sm:$0xff]
      %v334 = vld [vmem:[%s1 + $0x2e0] sm:$0xff]
      %v335 = vld [vmem:[%s1 + $0x2e8] sm:$0xff]
      %v336 = vld [vmem:[%s1 + $0x2f0] sm:$0xff]
      %v337 = vld [vmem:[%s1 + $0x2f8] sm:$0xff]
      %v338 = vld [vmem:[%s1 + $0x300] sm:$0xff]
      %v339 = vld [vmem:[%s1 + $0x308] sm:$0xff]
      %v340 = vld [vmem:[%s1 + $0x310] sm:$0xff]
      %v341 = vld [vmem:[%s1 + $0x318] sm:$0xff]
      %v342 = vld [vmem:[%s1 + $0x320] sm:$0xff]
      %v343 = vld [vmem:[%s1 + $0x328] sm:$0xff]
      %v344 = vld [vmem:[%s1 + $0x330] sm:$0xff]
      %v345 = vld [vmem:[%s1 + $0x338] sm:$0xff]
      %v346 = vld [vmem:[%s1 + $0x340] sm:$0xff]
      %v347 = vld [vmem:[%s1 + $0x348] sm:$0xff]
      %v348 = vld [vmem:[%s1 + $0x350] sm:$0xff]
      %v349 = vld [vmem:[%s1 + $0x358] sm:$0xff]
      %v350 = vld [vmem:[%s1 + $0x360] sm:$0xff]
      %v351 = vld [vmem:[%s1 + $0x368] sm:$0xff]
      %v352 = vld [vmem:[%s1 + $0x370] sm:$0xff]
      %v353 = vld [vmem:[%s1 + $0x378] sm:$0xff]
      %v354 = vld [vmem:[%s1 + $0x380] sm:$0xff]
      %v355 = vld [vmem:[%s1 + $0x388] sm:$0xff]
      %v356 = vld [vmem:[%s1 + $0x390] sm:$0xff]
      %v357 = vld [vmem:[%s1 + $0x398] sm:$0xff]
      %v358 = vld [vmem:[%s1 + $0x3a0] sm:$0xff]
      %v359 = vld [vmem:[%s1 + $0x3a8] sm:$0xff]
      %v360 = vld [vmem:[%s1 + $0x3b0] sm:$0xff]
      %v361 = vld [vmem:[%s1 + $0x3b8] sm:$0xff]
      %v362 = vld [vmem:[%s1 + $0x3c0] sm:$0xff]
      %v363 = vld [vmem:[%s1 + $0x3c8] sm:$0xff]
      %v364 = vld [vmem:[%s1 + $0x3d0] sm:$0xff]
      %v365 = vld [vmem:[%s1 + $0x3d8] sm:$0xff]
      %v366 = vld [vmem:[%s1 + $0x3e0] sm:$0xff]
      %v367 = vld [vmem:[%s1 + $0x3e8] sm:$0xff]
      %v368 = vld [vmem:[%s1 + $0x3f0] sm:$0xff]
      %v369 = vld [vmem:[%s1 + $0x3f8] sm:$0xff]
      %v370 = vld [vmem:[%s1 + $0x400] sm:$0xff]
      %v371 = vld [vmem:[%s1 + $0x408] sm:$0xff]
      %v372 = vld [vmem:[%s1 + $0x410] sm:$0xff]
      %v373 = vld [vmem:[%s1 + $0x418] sm:$0xff]
      %v374 = vld [vmem:[%s1 + $0x420] sm:$0xff]
      %v375 = vld [vmem:[%s1 + $0x428] sm:$0xff]
      %v376 = vld [vmem:[%s1 + $0x430] sm:$0xff]
      %v377 = vld [vmem:[%s1 + $0x438] sm:$0xff]
      %v378 = vld [vmem:[%s1 + $0x440] sm:$0xff]
      %v379 = vld [vmem:[%s1 + $0x448] sm:$0xff]
      %v380 = vld [vmem:[%s1 + $0x450] sm:$0xff]
      %v381 = vld [vmem:[%s1 + $0x458] sm:$0xff]
      %v382 = vld [vmem:[%s1 + $0x460] sm:$0xff]
      %v383 = vld [vmem:[%s1 + $0x468] sm:$0xff]
      %v384 = vld [vmem:[%s1 + $0x470] sm:$0xff]
      %v385 = vld [vmem:[%s1 + $0x478] sm:$0xff]
      %v386 = vld [vmem:[%s1 + $0x480] sm:$0xff]
      %v387 = vld [vmem:[%s1 + $0x488] sm:$0xff]
      %v388 = vld [vmem:[%s1 + $0x490] sm:$0xff]
      %v389 = vld [vmem:[%s1 + $0x498] sm:$0xff]
      %v390 = vld [vmem:[%s1 + $0x4a0] sm:$0xff]
      %v391 = vld [vmem:[%s1 + $0x4a8] sm:$0xff]
      %v392 = vld [vmem:[%s1 + $0x4b0] sm:$0xff]
      %v393 = vld [vmem:[%s1 + $0x4b8] sm:$0xff]
      %v394 = vld [vmem:[%s1 + $0x4c0] sm:$0xff]
      %v395 = vld [vmem:[%s1 + $0x4c8] sm:$0xff]
      %v396 = vld [vmem:[%s1 + $0x4d0] sm:$0xff]
      %v397 = vld [vmem:[%s1 + $0x4d8] sm:$0xff]
      %v398 = vld [vmem:[%s1 + $0x4e0] sm:$0xff]
      %v399 = vld [vmem:[%s1 + $0x4e8] sm:$0xff]
      %v400 = vld [vmem:[%s1 + $0x4f0] sm:$0xff]
      %v401 = vld [vmem:[%s1 + $0x4f8] sm:$0xff]
      %v402 = vld [vmem:[%s1 + $0x500] sm:$0xff]
      %v403 = vld [vmem:[%s1 + $0x508] sm:$0xff]
      %v404 = vld [vmem:[%s1 + $0x510] sm:$0xff]
      %v405 = vld [vmem:[%s1 + $0x518] sm:$0xff]
      %v406 = vld [vmem:[%s1 + $0x520] sm:$0xff]
      %v407 = vld [vmem:[%s1 + $0x528] sm:$0xff]
      %v408 = vld [vmem:[%s1 + $0x530] sm:$0xff]
      %v409 = vld [vmem:[%s1 + $0x538] sm:$0xff]
      %v410 = vld [vmem:[%s1 + $0x540] sm:$0xff]
      %v411 = vld [vmem:[%s1 + $0x548] sm:$0xff]
      %v412 = vld [vmem:[%s1 + $0x550] sm:$0xff]
      %v413 = vld [vmem:[%s1 + $0x558] sm:$0xff]
      %v414 = vld [vmem:[%s1 + $0x560] sm:$0xff]
      %v415 = vld [vmem:[%s1 + $0x568] sm:$0xff]
      %v416 = vld [vmem:[%s1 + $0x570] sm:$0xff]
      %v417 = vld [vmem:[%s1 + $0x578] sm:$0xff]
      %v418 = vld [vmem:[%s1 + $0x580] sm:$0xff]
      %v419 = vld [vmem:[%s1 + $0x588] sm:$0xff]
      %v420 = vld [vmem:[%s1 + $0x590] sm:$0xff]
      %v421 = vld [vmem:[%s1 + $0x598] sm:$0xff]
      %v422 = vld [vmem:[%s1 + $0x5a0] sm:$0xff]
      %v423 = vld [vmem:[%s1 + $0x5a8] sm:$0xff]
      %v424 = vld [vmem:[%s1 + $0x5b0] sm:$0xff]
      %v425 = vld [vmem:[%s1 + $0x5b8] sm:$0xff]
      %v426 = vld [vmem:[%s1 + $0x5c0] sm:$0xff]
      %v427 = vld [vmem:[%s1 + $0x5c8] sm:$0xff]
      %v428 = vld [vmem:[%s1 + $0x5d0] sm:$0xff]
      %v429 = vld [vmem:[%s1 + $0x5d8] sm:$0xff]
      %v430 = vld [vmem:[%s1 + $0x5e0] sm:$0xff]
      %v431 = vld [vmem:[%s1 + $0x5e8] sm:$0xff]
      %v432 = vld [vmem:[%s1 + $0x5f0] sm:$0xff]
      %v433 = vld [vmem:[%s1 + $0x5f8] sm:$0xff]
      %v434 = vld [vmem:[%s1 + $0x600] sm:$0xff]
      %v435 = vld [vmem:[%s1 + $0x608] sm:$0xff]
      %v436 = vld [vmem:[%s1 + $0x610] sm:$0xff]
      %v437 = vld [vmem:[%s1 + $0x618] sm:$0xff]
      %v438 = vld [vmem:[%s1 + $0x620] sm:$0xff]
      %v439 = vld [vmem:[%s1 + $0x628] sm:$0xff]
      %v440 = vld [vmem:[%s1 + $0x630] sm:$0xff]
      %v441 = vld [vmem:[%s1 + $0x638] sm:$0xff]
      %v442 = vld [vmem:[%s1 + $0x640] sm:$0xff]
      %v443 = vld [vmem:[%s1 + $0x648] sm:$0xff]
      %v444 = vld [vmem:[%s1 + $0x650] sm:$0xff]
      %v445 = vld [vmem:[%s1 + $0x658] sm:$0xff]
      %v446 = vld [vmem:[%s1 + $0x660] sm:$0xff]
      %v447 = vld [vmem:[%s1 + $0x668] sm:$0xff]
      %v448 = vld [vmem:[%s1 + $0x670] sm:$0xff]
      %v449 = vld [vmem:[%s1 + $0x678] sm:$0xff]
      %v450 = vld [vmem:[%s1 + $0x680] sm:$0xff]
      %v451 = vld [vmem:[%s1 + $0x688] sm:$0xff]
      %v452 = vld [vmem:[%s1 + $0x690] sm:$0xff]
      %v453 = vld [vmem:[%s1 + $0x698] sm:$0xff]
      %v454 = vld [vmem:[%s1 + $0x6a0] sm:$0xff]
      %v455 = vld [vmem:[%s1 + $0x6a8] sm:$0xff]
      %v456 = vld [vmem:[%s1 + $0x6b0] sm:$0xff]
      %v457 = vld [vmem:[%s1 + $0x6b8] sm:$0xff]
      %v458 = vld [vmem:[%s1 + $0x6c0] sm:$0xff]
      %v459 = vld [vmem:[%s1 + $0x6c8] sm:$0xff]
      %v460 = vld [vmem:[%s1 + $0x6d0] sm:$0xff]
      %v461 = vld [vmem:[%s1 + $0x6d8] sm:$0xff]
      %v462 = vld [vmem:[%s1 + $0x6e0] sm:$0xff]
      %v463 = vld [vmem:[%s1 + $0x6e8] sm:$0xff]
      %v464 = vld [vmem:[%s1 + $0x6f0] sm:$0xff]
      %v465 = vld [vmem:[%s1 + $0x6f8] sm:$0xff]
      %v466 = vld [vmem:[%s1 + $0x700] sm:$0xff]
      %v467 = vld [vmem:[%s1 + $0x708] sm:$0xff]
      %v468 = vld [vmem:[%s1 + $0x710] sm:$0xff]
      %v469 = vld [vmem:[%s1 + $0x718] sm:$0xff]
      %v470 = vld [vmem:[%s1 + $0x720] sm:$0xff]
      %v471 = vld [vmem:[%s1 + $0x728] sm:$0xff]
      %v472 = vld [vmem:[%s1 + $0x730] sm:$0xff]
      %v473 = vld [vmem:[%s1 + $0x738] sm:$0xff]
      %v474 = vld [vmem:[%s1 + $0x740] sm:$0xff]
      %v475 = vld [vmem:[%s1 + $0x748] sm:$0xff]
      %v476 = vld [vmem:[%s1 + $0x750] sm:$0xff]
      %v477 = vld [vmem:[%s1 + $0x758] sm:$0xff]
      %v478 = vld [vmem:[%s1 + $0x760] sm:$0xff]
      %v479 = vld [vmem:[%s1 + $0x768] sm:$0xff]
      %v480 = vld [vmem:[%s1 + $0x770] sm:$0xff]
      %v481 = vld [vmem:[%s1 + $0x778] sm:$0xff]
      %v482 = vld [vmem:[%s1 + $0x780] sm:$0xff]
      %v483 = vld [vmem:[%s1 + $0x788] sm:$0xff]
      %v484 = vld [vmem:[%s1 + $0x790] sm:$0xff]
      %v485 = vld [vmem:[%s1 + $0x798] sm:$0xff]
      %v486 = vld [vmem:[%s1 + $0x7a0] sm:$0xff]
      %v487 = vld [vmem:[%s1 + $0x7a8] sm:$0xff]
      %v488 = vld [vmem:[%s1 + $0x7b0] sm:$0xff]
      %v489 = vld [vmem:[%s1 + $0x7b8] sm:$0xff]
      %v490 = vld [vmem:[%s1 + $0x7c0] sm:$0xff]
      %v491 = vld [vmem:[%s1 + $0x7c8] sm:$0xff]
      %v492 = vld [vmem:[%s1 + $0x7d0] sm:$0xff]
      %v493 = vld [vmem:[%s1 + $0x7d8] sm:$0xff]
      %v494 = vld [vmem:[%s1 + $0x7e0] sm:$0xff]
      %v495 = vld [vmem:[%s1 + $0x7e8] sm:$0xff]
      %v496 = vld [vmem:[%s1 + $0x7f0] sm:$0xff]
      %v497 = vld [vmem:[%s1 + $0x7f8] sm:$0xff]
      %v562 = vunpack.c.l.b16 %v178
      %v563 = vunpack.c.h.b16 %v178
      %v564 = vunpack.c.l.b16 %v179
      %v565 = vunpack.c.h.b16 %v179
      %v566 = vunpack.c.l.b16 %v180
      %v567 = vunpack.c.h.b16 %v180
      %v568 = vunpack.c.l.b16 %v181
      %v569 = vunpack.c.h.b16 %v181
      %v570 = vunpack.c.l.b16 %v182
      %v571 = vunpack.c.h.b16 %v182
      %v572 = vunpack.c.l.b16 %v183
      %v573 = vunpack.c.h.b16 %v183
      %v574 = vunpack.c.l.b16 %v184
      %v575 = vunpack.c.h.b16 %v184
      %v576 = vunpack.c.l.b16 %v185
      %v577 = vunpack.c.h.b16 %v185
      %v578 = vunpack.c.l.b16 %v186
      %v579 = vunpack.c.h.b16 %v186
      %v580 = vunpack.c.l.b16 %v187
      %v581 = vunpack.c.h.b16 %v187
      %v582 = vunpack.c.l.b16 %v188
      %v583 = vunpack.c.h.b16 %v188
      %v584 = vunpack.c.l.b16 %v189
      %v585 = vunpack.c.h.b16 %v189
      %v586 = vunpack.c.l.b16 %v190
      %v587 = vunpack.c.h.b16 %v190
      %v588 = vunpack.c.l.b16 %v191
      %v589 = vunpack.c.h.b16 %v191
      %v590 = vunpack.c.l.b16 %v192
      %v591 = vunpack.c.h.b16 %v192
      %v592 = vunpack.c.l.b16 %v193
      %v593 = vunpack.c.h.b16 %v193
      %v594 = vunpack.c.l.b16 %v194
      %v595 = vunpack.c.h.b16 %v194
      %v596 = vunpack.c.l.b16 %v195
      %v597 = vunpack.c.h.b16 %v195
      %v598 = vunpack.c.l.b16 %v196
      %v599 = vunpack.c.h.b16 %v196
      %v600 = vunpack.c.l.b16 %v197
      %v601 = vunpack.c.h.b16 %v197
      %v602 = vunpack.c.l.b16 %v198
      %v603 = vunpack.c.h.b16 %v198
      %v604 = vunpack.c.l.b16 %v199
      %v605 = vunpack.c.h.b16 %v199
      %v606 = vunpack.c.l.b16 %v200
      %v607 = vunpack.c.h.b16 %v200
      %v608 = vunpack.c.l.b16 %v201
      %v609 = vunpack.c.h.b16 %v201
      %v610 = vunpack.c.l.b16 %v202
      %v611 = vunpack.c.h.b16 %v202
      %v612 = vunpack.c.l.b16 %v203
      %v613 = vunpack.c.h.b16 %v203
      %v614 = vunpack.c.l.b16 %v204
      %v615 = vunpack.c.h.b16 %v204
      %v616 = vunpack.c.l.b16 %v205
      %v617 = vunpack.c.h.b16 %v205
      %v618 = vunpack.c.l.b16 %v206
      %v619 = vunpack.c.h.b16 %v206
      %v620 = vunpack.c.l.b16 %v207
      %v621 = vunpack.c.h.b16 %v207
      %v622 = vunpack.c.l.b16 %v208
      %v623 = vunpack.c.h.b16 %v208
      %v624 = vunpack.c.l.b16 %v209
      %v625 = vunpack.c.h.b16 %v209
      %v626 = vunpack.c.l.b16 %v210
      %v627 = vunpack.c.h.b16 %v210
      %v628 = vunpack.c.l.b16 %v211
      %v629 = vunpack.c.h.b16 %v211
      %v630 = vunpack.c.l.b16 %v212
      %v631 = vunpack.c.h.b16 %v212
      %v632 = vunpack.c.l.b16 %v213
      %v633 = vunpack.c.h.b16 %v213
      %v634 = vunpack.c.l.b16 %v214
      %v635 = vunpack.c.h.b16 %v214
      %v636 = vunpack.c.l.b16 %v215
      %v637 = vunpack.c.h.b16 %v215
      %v638 = vunpack.c.l.b16 %v216
      %v639 = vunpack.c.h.b16 %v216
      %v640 = vunpack.c.l.b16 %v217
      %v641 = vunpack.c.h.b16 %v217
      %v642 = vunpack.c.l.b16 %v218
      %v643 = vunpack.c.h.b16 %v218
      %v644 = vunpack.c.l.b16 %v219
      %v645 = vunpack.c.h.b16 %v219
      %v646 = vunpack.c.l.b16 %v220
      %v647 = vunpack.c.h.b16 %v220
      %v648 = vunpack.c.l.b16 %v221
      %v649 = vunpack.c.h.b16 %v221
      %v650 = vunpack.c.l.b16 %v222
      %v651 = vunpack.c.h.b16 %v222
      %v652 = vunpack.c.l.b16 %v223
      %v653 = vunpack.c.h.b16 %v223
      %v654 = vunpack.c.l.b16 %v224
      %v655 = vunpack.c.h.b16 %v224
      %v656 = vunpack.c.l.b16 %v225
      %v657 = vunpack.c.h.b16 %v225
      %v658 = vunpack.c.l.b16 %v226
      %v659 = vunpack.c.h.b16 %v226
      %v660 = vunpack.c.l.b16 %v227
      %v661 = vunpack.c.h.b16 %v227
      %v662 = vunpack.c.l.b16 %v228
      %v663 = vunpack.c.h.b16 %v228
      %v664 = vunpack.c.l.b16 %v229
      %v665 = vunpack.c.h.b16 %v229
      %v666 = vunpack.c.l.b16 %v230
      %v667 = vunpack.c.h.b16 %v230
      %v668 = vunpack.c.l.b16 %v231
      %v669 = vunpack.c.h.b16 %v231
      %v670 = vunpack.c.l.b16 %v232
      %v671 = vunpack.c.h.b16 %v232
      %v672 = vunpack.c.l.b16 %v233
      %v673 = vunpack.c.h.b16 %v233
      %v674 = vunpack.c.l.b16 %v234
      %v675 = vunpack.c.h.b16 %v234
      %v676 = vunpack.c.l.b16 %v235
      %v677 = vunpack.c.h.b16 %v235
      %v678 = vunpack.c.l.b16 %v236
      %v679 = vunpack.c.h.b16 %v236
      %v680 = vunpack.c.l.b16 %v237
      %v681 = vunpack.c.h.b16 %v237
      %v682 = vunpack.c.l.b16 %v238
      %v683 = vunpack.c.h.b16 %v238
      %v684 = vunpack.c.l.b16 %v239
      %v685 = vunpack.c.h.b16 %v239
      %v686 = vunpack.c.l.b16 %v240
      %v687 = vunpack.c.h.b16 %v240
      %v688 = vunpack.c.l.b16 %v241
      %v689 = vunpack.c.h.b16 %v241
      %v690 = vpack.c.b16 %v570, %v562
      %v691 = vpack.c.b16 %v571, %v563
      %v692 = vpack.c.b16 %v572, %v564
      %v693 = vpack.c.b16 %v573, %v565
      %v694 = vpack.c.b16 %v574, %v566
      %v695 = vpack.c.b16 %v575, %v567
      %v696 = vpack.c.b16 %v576, %v568
      %v697 = vpack.c.b16 %v577, %v569
      %v698 = vpack.c.b16 %v586, %v578
      %v699 = vpack.c.b16 %v587, %v579
      %v700 = vpack.c.b16 %v588, %v580
      %v701 = vpack.c.b16 %v589, %v581
      %v702 = vpack.c.b16 %v590, %v582
      %v703 = vpack.c.b16 %v591, %v583
      %v704 = vpack.c.b16 %v592, %v584
      %v705 = vpack.c.b16 %v593, %v585
      %v706 = vpack.c.b16 %v602, %v594
      %v707 = vpack.c.b16 %v603, %v595
      %v708 = vpack.c.b16 %v604, %v596
      %v709 = vpack.c.b16 %v605, %v597
      %v710 = vpack.c.b16 %v606, %v598
      %v711 = vpack.c.b16 %v607, %v599
      %v712 = vpack.c.b16 %v608, %v600
      %v713 = vpack.c.b16 %v609, %v601
      %v714 = vpack.c.b16 %v618, %v610
      %v715 = vpack.c.b16 %v619, %v611
      %v716 = vpack.c.b16 %v620, %v612
      %v717 = vpack.c.b16 %v621, %v613
      %v718 = vpack.c.b16 %v622, %v614
      %v719 = vpack.c.b16 %v623, %v615
      %v720 = vpack.c.b16 %v624, %v616
      %v721 = vpack.c.b16 %v625, %v617
      %v722 = vpack.c.b16 %v634, %v626
      %v723 = vpack.c.b16 %v635, %v627
      %v724 = vpack.c.b16 %v636, %v628
      %v725 = vpack.c.b16 %v637, %v629
      %v726 = vpack.c.b16 %v638, %v630
      %v727 = vpack.c.b16 %v639, %v631
      %v728 = vpack.c.b16 %v640, %v632
      %v729 = vpack.c.b16 %v641, %v633
      %v730 = vpack.c.b16 %v650, %v642
      %v731 = vpack.c.b16 %v651, %v643
      %v732 = vpack.c.b16 %v652, %v644
      %v733 = vpack.c.b16 %v653, %v645
      %v734 = vpack.c.b16 %v654, %v646
      %v735 = vpack.c.b16 %v655, %v647
      %v736 = vpack.c.b16 %v656, %v648
      %v737 = vpack.c.b16 %v657, %v649
      %v738 = vpack.c.b16 %v666, %v658
      %v739 = vpack.c.b16 %v667, %v659
      %v740 = vpack.c.b16 %v668, %v660
      %v741 = vpack.c.b16 %v669, %v661
      %v742 = vpack.c.b16 %v670, %v662
      %v743 = vpack.c.b16 %v671, %v663
      %v744 = vpack.c.b16 %v672, %v664
      %v745 = vpack.c.b16 %v673, %v665
      %v746 = vpack.c.b16 %v682, %v674
      %v747 = vpack.c.b16 %v683, %v675
      %v748 = vpack.c.b16 %v684, %v676
      %v749 = vpack.c.b16 %v685, %v677
      %v750 = vpack.c.b16 %v686, %v678
      %v751 = vpack.c.b16 %v687, %v679
      %v752 = vpack.c.b16 %v688, %v680
      %v753 = vpack.c.b16 %v689, %v681
      %v1074 = vunpack.c.l.b16 %v242
      %v1075 = vunpack.c.h.b16 %v242
      %v1076 = vunpack.c.l.b16 %v243
      %v1077 = vunpack.c.h.b16 %v243
      %v1078 = vunpack.c.l.b16 %v244
      %v1079 = vunpack.c.h.b16 %v244
      %v1080 = vunpack.c.l.b16 %v245
      %v1081 = vunpack.c.h.b16 %v245
      %v1082 = vunpack.c.l.b16 %v246
      %v1083 = vunpack.c.h.b16 %v246
      %v1084 = vunpack.c.l.b16 %v247
      %v1085 = vunpack.c.h.b16 %v247
      %v1086 = vunpack.c.l.b16 %v248
      %v1087 = vunpack.c.h.b16 %v248
      %v1088 = vunpack.c.l.b16 %v249
      %v1089 = vunpack.c.h.b16 %v249
      %v1090 = vunpack.c.l.b16 %v250
      %v1091 = vunpack.c.h.b16 %v250
      %v1092 = vunpack.c.l.b16 %v251
      %v1093 = vunpack.c.h.b16 %v251
      %v1094 = vunpack.c.l.b16 %v252
      %v1095 = vunpack.c.h.b16 %v252
      %v1096 = vunpack.c.l.b16 %v253
      %v1097 = vunpack.c.h.b16 %v253
      %v1098 = vunpack.c.l.b16 %v254
      %v1099 = vunpack.c.h.b16 %v254
      %v1100 = vunpack.c.l.b16 %v255
      %v1101 = vunpack.c.h.b16 %v255
      %v1102 = vunpack.c.l.b16 %v256
      %v1103 = vunpack.c.h.b16 %v256
      %v1104 = vunpack.c.l.b16 %v257
      %v1105 = vunpack.c.h.b16 %v257
      %v1106 = vunpack.c.l.b16 %v258
      %v1107 = vunpack.c.h.b16 %v258
      %v1108 = vunpack.c.l.b16 %v259
      %v1109 = vunpack.c.h.b16 %v259
      %v1110 = vunpack.c.l.b16 %v260
      %v1111 = vunpack.c.h.b16 %v260
      %v1112 = vunpack.c.l.b16 %v261
      %v1113 = vunpack.c.h.b16 %v261
      %v1114 = vunpack.c.l.b16 %v262
      %v1115 = vunpack.c.h.b16 %v262
      %v1116 = vunpack.c.l.b16 %v263
      %v1117 = vunpack.c.h.b16 %v263
      %v1118 = vunpack.c.l.b16 %v264
      %v1119 = vunpack.c.h.b16 %v264
      %v1120 = vunpack.c.l.b16 %v265
      %v1121 = vunpack.c.h.b16 %v265
      %v1122 = vunpack.c.l.b16 %v266
      %v1123 = vunpack.c.h.b16 %v266
      %v1124 = vunpack.c.l.b16 %v267
      %v1125 = vunpack.c.h.b16 %v267
      %v1126 = vunpack.c.l.b16 %v268
      %v1127 = vunpack.c.h.b16 %v268
      %v1128 = vunpack.c.l.b16 %v269
      %v1129 = vunpack.c.h.b16 %v269
      %v1130 = vunpack.c.l.b16 %v270
      %v1131 = vunpack.c.h.b16 %v270
      %v1132 = vunpack.c.l.b16 %v271
      %v1133 = vunpack.c.h.b16 %v271
      %v1134 = vunpack.c.l.b16 %v272
      %v1135 = vunpack.c.h.b16 %v272
      %v1136 = vunpack.c.l.b16 %v273
      %v1137 = vunpack.c.h.b16 %v273
      %v1138 = vunpack.c.l.b16 %v274
      %v1139 = vunpack.c.h.b16 %v274
      %v1140 = vunpack.c.l.b16 %v275
      %v1141 = vunpack.c.h.b16 %v275
      %v1142 = vunpack.c.l.b16 %v276
      %v1143 = vunpack.c.h.b16 %v276
      %v1144 = vunpack.c.l.b16 %v277
      %v1145 = vunpack.c.h.b16 %v277
      %v1146 = vunpack.c.l.b16 %v278
      %v1147 = vunpack.c.h.b16 %v278
      %v1148 = vunpack.c.l.b16 %v279
      %v1149 = vunpack.c.h.b16 %v279
      %v1150 = vunpack.c.l.b16 %v280
      %v1151 = vunpack.c.h.b16 %v280
      %v1152 = vunpack.c.l.b16 %v281
      %v1153 = vunpack.c.h.b16 %v281
      %v1154 = vunpack.c.l.b16 %v282
      %v1155 = vunpack.c.h.b16 %v282
      %v1156 = vunpack.c.l.b16 %v283
      %v1157 = vunpack.c.h.b16 %v283
      %v1158 = vunpack.c.l.b16 %v284
      %v1159 = vunpack.c.h.b16 %v284
      %v1160 = vunpack.c.l.b16 %v285
      %v1161 = vunpack.c.h.b16 %v285
      %v1162 = vunpack.c.l.b16 %v286
      %v1163 = vunpack.c.h.b16 %v286
      %v1164 = vunpack.c.l.b16 %v287
      %v1165 = vunpack.c.h.b16 %v287
      %v1166 = vunpack.c.l.b16 %v288
      %v1167 = vunpack.c.h.b16 %v288
      %v1168 = vunpack.c.l.b16 %v289
      %v1169 = vunpack.c.h.b16 %v289
      %v1170 = vunpack.c.l.b16 %v290
      %v1171 = vunpack.c.h.b16 %v290
      %v1172 = vunpack.c.l.b16 %v291
      %v1173 = vunpack.c.h.b16 %v291
      %v1174 = vunpack.c.l.b16 %v292
      %v1175 = vunpack.c.h.b16 %v292
      %v1176 = vunpack.c.l.b16 %v293
      %v1177 = vunpack.c.h.b16 %v293
      %v1178 = vunpack.c.l.b16 %v294
      %v1179 = vunpack.c.h.b16 %v294
      %v1180 = vunpack.c.l.b16 %v295
      %v1181 = vunpack.c.h.b16 %v295
      %v1182 = vunpack.c.l.b16 %v296
      %v1183 = vunpack.c.h.b16 %v296
      %v1184 = vunpack.c.l.b16 %v297
      %v1185 = vunpack.c.h.b16 %v297
      %v1186 = vunpack.c.l.b16 %v298
      %v1187 = vunpack.c.h.b16 %v298
      %v1188 = vunpack.c.l.b16 %v299
      %v1189 = vunpack.c.h.b16 %v299
      %v1190 = vunpack.c.l.b16 %v300
      %v1191 = vunpack.c.h.b16 %v300
      %v1192 = vunpack.c.l.b16 %v301
      %v1193 = vunpack.c.h.b16 %v301
      %v1194 = vunpack.c.l.b16 %v302
      %v1195 = vunpack.c.h.b16 %v302
      %v1196 = vunpack.c.l.b16 %v303
      %v1197 = vunpack.c.h.b16 %v303
      %v1198 = vunpack.c.l.b16 %v304
      %v1199 = vunpack.c.h.b16 %v304
      %v1200 = vunpack.c.l.b16 %v305
      %v1201 = vunpack.c.h.b16 %v305
      %v1202 = vunpack.c.l.b16 %v306
      %v1203 = vunpack.c.h.b16 %v306
      %v1204 = vunpack.c.l.b16 %v307
      %v1205 = vunpack.c.h.b16 %v307
      %v1206 = vunpack.c.l.b16 %v308
      %v1207 = vunpack.c.h.b16 %v308
      %v1208 = vunpack.c.l.b16 %v309
      %v1209 = vunpack.c.h.b16 %v309
      %v1210 = vunpack.c.l.b16 %v310
      %v1211 = vunpack.c.h.b16 %v310
      %v1212 = vunpack.c.l.b16 %v311
      %v1213 = vunpack.c.h.b16 %v311
      %v1214 = vunpack.c.l.b16 %v312
      %v1215 = vunpack.c.h.b16 %v312
      %v1216 = vunpack.c.l.b16 %v313
      %v1217 = vunpack.c.h.b16 %v313
      %v1218 = vunpack.c.l.b16 %v314
      %v1219 = vunpack.c.h.b16 %v314
      %v1220 = vunpack.c.l.b16 %v315
      %v1221 = vunpack.c.h.b16 %v315
      %v1222 = vunpack.c.l.b16 %v316
      %v1223 = vunpack.c.h.b16 %v316
      %v1224 = vunpack.c.l.b16 %v317
      %v1225 = vunpack.c.h.b16 %v317
      %v1226 = vunpack.c.l.b16 %v318
      %v1227 = vunpack.c.h.b16 %v318
      %v1228 = vunpack.c.l.b16 %v319
      %v1229 = vunpack.c.h.b16 %v319
      %v1230 = vunpack.c.l.b16 %v320
      %v1231 = vunpack.c.h.b16 %v320
      %v1232 = vunpack.c.l.b16 %v321
      %v1233 = vunpack.c.h.b16 %v321
      %v1234 = vunpack.c.l.b16 %v322
      %v1235 = vunpack.c.h.b16 %v322
      %v1236 = vunpack.c.l.b16 %v323
      %v1237 = vunpack.c.h.b16 %v323
      %v1238 = vunpack.c.l.b16 %v324
      %v1239 = vunpack.c.h.b16 %v324
      %v1240 = vunpack.c.l.b16 %v325
      %v1241 = vunpack.c.h.b16 %v325
      %v1242 = vunpack.c.l.b16 %v326
      %v1243 = vunpack.c.h.b16 %v326
      %v1244 = vunpack.c.l.b16 %v327
      %v1245 = vunpack.c.h.b16 %v327
      %v1246 = vunpack.c.l.b16 %v328
      %v1247 = vunpack.c.h.b16 %v328
      %v1248 = vunpack.c.l.b16 %v329
      %v1249 = vunpack.c.h.b16 %v329
      %v1250 = vunpack.c.l.b16 %v330
      %v1251 = vunpack.c.h.b16 %v330
      %v1252 = vunpack.c.l.b16 %v331
      %v1253 = vunpack.c.h.b16 %v331
      %v1254 = vunpack.c.l.b16 %v332
      %v1255 = vunpack.c.h.b16 %v332
      %v1256 = vunpack.c.l.b16 %v333
      %v1257 = vunpack.c.h.b16 %v333
      %v1258 = vunpack.c.l.b16 %v334
      %v1259 = vunpack.c.h.b16 %v334
      %v1260 = vunpack.c.l.b16 %v335
      %v1261 = vunpack.c.h.b16 %v335
      %v1262 = vunpack.c.l.b16 %v336
      %v1263 = vunpack.c.h.b16 %v336
      %v1264 = vunpack.c.l.b16 %v337
      %v1265 = vunpack.c.h.b16 %v337
      %v1266 = vunpack.c.l.b16 %v338
      %v1267 = vunpack.c.h.b16 %v338
      %v1268 = vunpack.c.l.b16 %v339
      %v1269 = vunpack.c.h.b16 %v339
      %v1270 = vunpack.c.l.b16 %v340
      %v1271 = vunpack.c.h.b16 %v340
      %v1272 = vunpack.c.l.b16 %v341
      %v1273 = vunpack.c.h.b16 %v341
      %v1274 = vunpack.c.l.b16 %v342
      %v1275 = vunpack.c.h.b16 %v342
      %v1276 = vunpack.c.l.b16 %v343
      %v1277 = vunpack.c.h.b16 %v343
      %v1278 = vunpack.c.l.b16 %v344
      %v1279 = vunpack.c.h.b16 %v344
      %v1280 = vunpack.c.l.b16 %v345
      %v1281 = vunpack.c.h.b16 %v345
      %v1282 = vunpack.c.l.b16 %v346
      %v1283 = vunpack.c.h.b16 %v346
      %v1284 = vunpack.c.l.b16 %v347
      %v1285 = vunpack.c.h.b16 %v347
      %v1286 = vunpack.c.l.b16 %v348
      %v1287 = vunpack.c.h.b16 %v348
      %v1288 = vunpack.c.l.b16 %v349
      %v1289 = vunpack.c.h.b16 %v349
      %v1290 = vunpack.c.l.b16 %v350
      %v1291 = vunpack.c.h.b16 %v350
      %v1292 = vunpack.c.l.b16 %v351
      %v1293 = vunpack.c.h.b16 %v351
      %v1294 = vunpack.c.l.b16 %v352
      %v1295 = vunpack.c.h.b16 %v352
      %v1296 = vunpack.c.l.b16 %v353
      %v1297 = vunpack.c.h.b16 %v353
      %v1298 = vunpack.c.l.b16 %v354
      %v1299 = vunpack.c.h.b16 %v354
      %v1300 = vunpack.c.l.b16 %v355
      %v1301 = vunpack.c.h.b16 %v355
      %v1302 = vunpack.c.l.b16 %v356
      %v1303 = vunpack.c.h.b16 %v356
      %v1304 = vunpack.c.l.b16 %v357
      %v1305 = vunpack.c.h.b16 %v357
      %v1306 = vunpack.c.l.b16 %v358
      %v1307 = vunpack.c.h.b16 %v358
      %v1308 = vunpack.c.l.b16 %v359
      %v1309 = vunpack.c.h.b16 %v359
      %v1310 = vunpack.c.l.b16 %v360
      %v1311 = vunpack.c.h.b16 %v360
      %v1312 = vunpack.c.l.b16 %v361
      %v1313 = vunpack.c.h.b16 %v361
      %v1314 = vunpack.c.l.b16 %v362
      %v1315 = vunpack.c.h.b16 %v362
      %v1316 = vunpack.c.l.b16 %v363
      %v1317 = vunpack.c.h.b16 %v363
      %v1318 = vunpack.c.l.b16 %v364
      %v1319 = vunpack.c.h.b16 %v364
      %v1320 = vunpack.c.l.b16 %v365
      %v1321 = vunpack.c.h.b16 %v365
      %v1322 = vunpack.c.l.b16 %v366
      %v1323 = vunpack.c.h.b16 %v366
      %v1324 = vunpack.c.l.b16 %v367
      %v1325 = vunpack.c.h.b16 %v367
      %v1326 = vunpack.c.l.b16 %v368
      %v1327 = vunpack.c.h.b16 %v368
      %v1328 = vunpack.c.l.b16 %v369
      %v1329 = vunpack.c.h.b16 %v369
      %v1330 = vunpack.c.l.b16 %v370
      %v1331 = vunpack.c.h.b16 %v370
      %v1332 = vunpack.c.l.b16 %v371
      %v1333 = vunpack.c.h.b16 %v371
      %v1334 = vunpack.c.l.b16 %v372
      %v1335 = vunpack.c.h.b16 %v372
      %v1336 = vunpack.c.l.b16 %v373
      %v1337 = vunpack.c.h.b16 %v373
      %v1338 = vunpack.c.l.b16 %v374
      %v1339 = vunpack.c.h.b16 %v374
      %v1340 = vunpack.c.l.b16 %v375
      %v1341 = vunpack.c.h.b16 %v375
      %v1342 = vunpack.c.l.b16 %v376
      %v1343 = vunpack.c.h.b16 %v376
      %v1344 = vunpack.c.l.b16 %v377
      %v1345 = vunpack.c.h.b16 %v377
      %v1346 = vunpack.c.l.b16 %v378
      %v1347 = vunpack.c.h.b16 %v378
      %v1348 = vunpack.c.l.b16 %v379
      %v1349 = vunpack.c.h.b16 %v379
      %v1350 = vunpack.c.l.b16 %v380
      %v1351 = vunpack.c.h.b16 %v380
      %v1352 = vunpack.c.l.b16 %v381
      %v1353 = vunpack.c.h.b16 %v381
      %v1354 = vunpack.c.l.b16 %v382
      %v1355 = vunpack.c.h.b16 %v382
      %v1356 = vunpack.c.l.b16 %v383
      %v1357 = vunpack.c.h.b16 %v383
      %v1358 = vunpack.c.l.b16 %v384
      %v1359 = vunpack.c.h.b16 %v384
      %v1360 = vunpack.c.l.b16 %v385
      %v1361 = vunpack.c.h.b16 %v385
      %v1362 = vunpack.c.l.b16 %v386
      %v1363 = vunpack.c.h.b16 %v386
      %v1364 = vunpack.c.l.b16 %v387
      %v1365 = vunpack.c.h.b16 %v387
      %v1366 = vunpack.c.l.b16 %v388
      %v1367 = vunpack.c.h.b16 %v388
      %v1368 = vunpack.c.l.b16 %v389
      %v1369 = vunpack.c.h.b16 %v389
      %v1370 = vunpack.c.l.b16 %v390
      %v1371 = vunpack.c.h.b16 %v390
      %v1372 = vunpack.c.l.b16 %v391
      %v1373 = vunpack.c.h.b16 %v391
      %v1374 = vunpack.c.l.b16 %v392
      %v1375 = vunpack.c.h.b16 %v392
      %v1376 = vunpack.c.l.b16 %v393
      %v1377 = vunpack.c.h.b16 %v393
      %v1378 = vunpack.c.l.b16 %v394
      %v1379 = vunpack.c.h.b16 %v394
      %v1380 = vunpack.c.l.b16 %v395
      %v1381 = vunpack.c.h.b16 %v395
      %v1382 = vunpack.c.l.b16 %v396
      %v1383 = vunpack.c.h.b16 %v396
      %v1384 = vunpack.c.l.b16 %v397
      %v1385 = vunpack.c.h.b16 %v397
      %v1386 = vunpack.c.l.b16 %v398
      %v1387 = vunpack.c.h.b16 %v398
      %v1388 = vunpack.c.l.b16 %v399
      %v1389 = vunpack.c.h.b16 %v399
      %v1390 = vunpack.c.l.b16 %v400
      %v1391 = vunpack.c.h.b16 %v400
      %v1392 = vunpack.c.l.b16 %v401
      %v1393 = vunpack.c.h.b16 %v401
      %v1394 = vunpack.c.l.b16 %v402
      %v1395 = vunpack.c.h.b16 %v402
      %v1396 = vunpack.c.l.b16 %v403
      %v1397 = vunpack.c.h.b16 %v403
      %v1398 = vunpack.c.l.b16 %v404
      %v1399 = vunpack.c.h.b16 %v404
      %v1400 = vunpack.c.l.b16 %v405
      %v1401 = vunpack.c.h.b16 %v405
      %v1402 = vunpack.c.l.b16 %v406
      %v1403 = vunpack.c.h.b16 %v406
      %v1404 = vunpack.c.l.b16 %v407
      %v1405 = vunpack.c.h.b16 %v407
      %v1406 = vunpack.c.l.b16 %v408
      %v1407 = vunpack.c.h.b16 %v408
      %v1408 = vunpack.c.l.b16 %v409
      %v1409 = vunpack.c.h.b16 %v409
      %v1410 = vunpack.c.l.b16 %v410
      %v1411 = vunpack.c.h.b16 %v410
      %v1412 = vunpack.c.l.b16 %v411
      %v1413 = vunpack.c.h.b16 %v411
      %v1414 = vunpack.c.l.b16 %v412
      %v1415 = vunpack.c.h.b16 %v412
      %v1416 = vunpack.c.l.b16 %v413
      %v1417 = vunpack.c.h.b16 %v413
      %v1418 = vunpack.c.l.b16 %v414
      %v1419 = vunpack.c.h.b16 %v414
      %v1420 = vunpack.c.l.b16 %v415
      %v1421 = vunpack.c.h.b16 %v415
      %v1422 = vunpack.c.l.b16 %v416
      %v1423 = vunpack.c.h.b16 %v416
      %v1424 = vunpack.c.l.b16 %v417
      %v1425 = vunpack.c.h.b16 %v417
      %v1426 = vunpack.c.l.b16 %v418
      %v1427 = vunpack.c.h.b16 %v418
      %v1428 = vunpack.c.l.b16 %v419
      %v1429 = vunpack.c.h.b16 %v419
      %v1430 = vunpack.c.l.b16 %v420
      %v1431 = vunpack.c.h.b16 %v420
      %v1432 = vunpack.c.l.b16 %v421
      %v1433 = vunpack.c.h.b16 %v421
      %v1434 = vunpack.c.l.b16 %v422
      %v1435 = vunpack.c.h.b16 %v422
      %v1436 = vunpack.c.l.b16 %v423
      %v1437 = vunpack.c.h.b16 %v423
      %v1438 = vunpack.c.l.b16 %v424
      %v1439 = vunpack.c.h.b16 %v424
      %v1440 = vunpack.c.l.b16 %v425
      %v1441 = vunpack.c.h.b16 %v425
      %v1442 = vunpack.c.l.b16 %v426
      %v1443 = vunpack.c.h.b16 %v426
      %v1444 = vunpack.c.l.b16 %v427
      %v1445 = vunpack.c.h.b16 %v427
      %v1446 = vunpack.c.l.b16 %v428
      %v1447 = vunpack.c.h.b16 %v428
      %v1448 = vunpack.c.l.b16 %v429
      %v1449 = vunpack.c.h.b16 %v429
      %v1450 = vunpack.c.l.b16 %v430
      %v1451 = vunpack.c.h.b16 %v430
      %v1452 = vunpack.c.l.b16 %v431
      %v1453 = vunpack.c.h.b16 %v431
      %v1454 = vunpack.c.l.b16 %v432
      %v1455 = vunpack.c.h.b16 %v432
      %v1456 = vunpack.c.l.b16 %v433
      %v1457 = vunpack.c.h.b16 %v433
      %v1458 = vunpack.c.l.b16 %v434
      %v1459 = vunpack.c.h.b16 %v434
      %v1460 = vunpack.c.l.b16 %v435
      %v1461 = vunpack.c.h.b16 %v435
      %v1462 = vunpack.c.l.b16 %v436
      %v1463 = vunpack.c.h.b16 %v436
      %v1464 = vunpack.c.l.b16 %v437
      %v1465 = vunpack.c.h.b16 %v437
      %v1466 = vunpack.c.l.b16 %v438
      %v1467 = vunpack.c.h.b16 %v438
      %v1468 = vunpack.c.l.b16 %v439
      %v1469 = vunpack.c.h.b16 %v439
      %v1470 = vunpack.c.l.b16 %v440
      %v1471 = vunpack.c.h.b16 %v440
      %v1472 = vunpack.c.l.b16 %v441
      %v1473 = vunpack.c.h.b16 %v441
      %v1474 = vunpack.c.l.b16 %v442
      %v1475 = vunpack.c.h.b16 %v442
      %v1476 = vunpack.c.l.b16 %v443
      %v1477 = vunpack.c.h.b16 %v443
      %v1478 = vunpack.c.l.b16 %v444
      %v1479 = vunpack.c.h.b16 %v444
      %v1480 = vunpack.c.l.b16 %v445
      %v1481 = vunpack.c.h.b16 %v445
      %v1482 = vunpack.c.l.b16 %v446
      %v1483 = vunpack.c.h.b16 %v446
      %v1484 = vunpack.c.l.b16 %v447
      %v1485 = vunpack.c.h.b16 %v447
      %v1486 = vunpack.c.l.b16 %v448
      %v1487 = vunpack.c.h.b16 %v448
      %v1488 = vunpack.c.l.b16 %v449
      %v1489 = vunpack.c.h.b16 %v449
      %v1490 = vunpack.c.l.b16 %v450
      %v1491 = vunpack.c.h.b16 %v450
      %v1492 = vunpack.c.l.b16 %v451
      %v1493 = vunpack.c.h.b16 %v451
      %v1494 = vunpack.c.l.b16 %v452
      %v1495 = vunpack.c.h.b16 %v452
      %v1496 = vunpack.c.l.b16 %v453
      %v1497 = vunpack.c.h.b16 %v453
      %v1498 = vunpack.c.l.b16 %v454
      %v1499 = vunpack.c.h.b16 %v454
      %v1500 = vunpack.c.l.b16 %v455
      %v1501 = vunpack.c.h.b16 %v455
      %v1502 = vunpack.c.l.b16 %v456
      %v1503 = vunpack.c.h.b16 %v456
      %v1504 = vunpack.c.l.b16 %v457
      %v1505 = vunpack.c.h.b16 %v457
      %v1506 = vunpack.c.l.b16 %v458
      %v1507 = vunpack.c.h.b16 %v458
      %v1508 = vunpack.c.l.b16 %v459
      %v1509 = vunpack.c.h.b16 %v459
      %v1510 = vunpack.c.l.b16 %v460
      %v1511 = vunpack.c.h.b16 %v460
      %v1512 = vunpack.c.l.b16 %v461
      %v1513 = vunpack.c.h.b16 %v461
      %v1514 = vunpack.c.l.b16 %v462
      %v1515 = vunpack.c.h.b16 %v462
      %v1516 = vunpack.c.l.b16 %v463
      %v1517 = vunpack.c.h.b16 %v463
      %v1518 = vunpack.c.l.b16 %v464
      %v1519 = vunpack.c.h.b16 %v464
      %v1520 = vunpack.c.l.b16 %v465
      %v1521 = vunpack.c.h.b16 %v465
      %v1522 = vunpack.c.l.b16 %v466
      %v1523 = vunpack.c.h.b16 %v466
      %v1524 = vunpack.c.l.b16 %v467
      %v1525 = vunpack.c.h.b16 %v467
      %v1526 = vunpack.c.l.b16 %v468
      %v1527 = vunpack.c.h.b16 %v468
      %v1528 = vunpack.c.l.b16 %v469
      %v1529 = vunpack.c.h.b16 %v469
      %v1530 = vunpack.c.l.b16 %v470
      %v1531 = vunpack.c.h.b16 %v470
      %v1532 = vunpack.c.l.b16 %v471
      %v1533 = vunpack.c.h.b16 %v471
      %v1534 = vunpack.c.l.b16 %v472
      %v1535 = vunpack.c.h.b16 %v472
      %v1536 = vunpack.c.l.b16 %v473
      %v1537 = vunpack.c.h.b16 %v473
      %v1538 = vunpack.c.l.b16 %v474
      %v1539 = vunpack.c.h.b16 %v474
      %v1540 = vunpack.c.l.b16 %v475
      %v1541 = vunpack.c.h.b16 %v475
      %v1542 = vunpack.c.l.b16 %v476
      %v1543 = vunpack.c.h.b16 %v476
      %v1544 = vunpack.c.l.b16 %v477
      %v1545 = vunpack.c.h.b16 %v477
      %v1546 = vunpack.c.l.b16 %v478
      %v1547 = vunpack.c.h.b16 %v478
      %v1548 = vunpack.c.l.b16 %v479
      %v1549 = vunpack.c.h.b16 %v479
      %v1550 = vunpack.c.l.b16 %v480
      %v1551 = vunpack.c.h.b16 %v480
      %v1552 = vunpack.c.l.b16 %v481
      %v1553 = vunpack.c.h.b16 %v481
      %v1554 = vunpack.c.l.b16 %v482
      %v1555 = vunpack.c.h.b16 %v482
      %v1556 = vunpack.c.l.b16 %v483
      %v1557 = vunpack.c.h.b16 %v483
      %v1558 = vunpack.c.l.b16 %v484
      %v1559 = vunpack.c.h.b16 %v484
      %v1560 = vunpack.c.l.b16 %v485
      %v1561 = vunpack.c.h.b16 %v485
      %v1562 = vunpack.c.l.b16 %v486
      %v1563 = vunpack.c.h.b16 %v486
      %v1564 = vunpack.c.l.b16 %v487
      %v1565 = vunpack.c.h.b16 %v487
      %v1566 = vunpack.c.l.b16 %v488
      %v1567 = vunpack.c.h.b16 %v488
      %v1568 = vunpack.c.l.b16 %v489
      %v1569 = vunpack.c.h.b16 %v489
      %v1570 = vunpack.c.l.b16 %v490
      %v1571 = vunpack.c.h.b16 %v490
      %v1572 = vunpack.c.l.b16 %v491
      %v1573 = vunpack.c.h.b16 %v491
      %v1574 = vunpack.c.l.b16 %v492
      %v1575 = vunpack.c.h.b16 %v492
      %v1576 = vunpack.c.l.b16 %v493
      %v1577 = vunpack.c.h.b16 %v493
      %v1578 = vunpack.c.l.b16 %v494
      %v1579 = vunpack.c.h.b16 %v494
      %v1580 = vunpack.c.l.b16 %v495
      %v1581 = vunpack.c.h.b16 %v495
      %v1582 = vunpack.c.l.b16 %v496
      %v1583 = vunpack.c.h.b16 %v496
      %v1584 = vunpack.c.l.b16 %v497
      %v1585 = vunpack.c.h.b16 %v497
      %v1586 = vpack.c.b16 %v1078, %v1074
      %v1587 = vpack.c.b16 %v1079, %v1075
      %v1588 = vpack.c.b16 %v1080, %v1076
      %v1589 = vpack.c.b16 %v1081, %v1077
      %v1590 = vpack.c.b16 %v1086, %v1082
      %v1591 = vpack.c.b16 %v1087, %v1083
      %v1592 = vpack.c.b16 %v1088, %v1084
      %v1593 = vpack.c.b16 %v1089, %v1085
      %v1594 = vpack.c.b16 %v1094, %v1090
      %v1595 = vpack.c.b16 %v1095, %v1091
      %v1596 = vpack.c.b16 %v1096, %v1092
      %v1597 = vpack.c.b16 %v1097, %v1093
      %v1598 = vpack.c.b16 %v1102, %v1098
      %v1599 = vpack.c.b16 %v1103, %v1099
      %v1600 = vpack.c.b16 %v1104, %v1100
      %v1601 = vpack.c.b16 %v1105, %v1101
      %v1602 = vpack.c.b16 %v1110, %v1106
      %v1603 = vpack.c.b16 %v1111, %v1107
      %v1604 = vpack.c.b16 %v1112, %v1108
      %v1605 = vpack.c.b16 %v1113, %v1109
      %v1606 = vpack.c.b16 %v1118, %v1114
      %v1607 = vpack.c.b16 %v1119, %v1115
      %v1608 = vpack.c.b16 %v1120, %v1116
      %v1609 = vpack.c.b16 %v1121, %v1117
      %v1610 = vpack.c.b16 %v1126, %v1122
      %v1611 = vpack.c.b16 %v1127, %v1123
      %v1612 = vpack.c.b16 %v1128, %v1124
      %v1613 = vpack.c.b16 %v1129, %v1125
      %v1614 = vpack.c.b16 %v1134, %v1130
      %v1615 = vpack.c.b16 %v1135, %v1131
      %v1616 = vpack.c.b16 %v1136, %v1132
      %v1617 = vpack.c.b16 %v1137, %v1133
      %v1618 = vpack.c.b16 %v1142, %v1138
      %v1619 = vpack.c.b16 %v1143, %v1139
      %v1620 = vpack.c.b16 %v1144, %v1140
      %v1621 = vpack.c.b16 %v1145, %v1141
      %v1622 = vpack.c.b16 %v1150, %v1146
      %v1623 = vpack.c.b16 %v1151, %v1147
      %v1624 = vpack.c.b16 %v1152, %v1148
      %v1625 = vpack.c.b16 %v1153, %v1149
      %v1626 = vpack.c.b16 %v1158, %v1154
      %v1627 = vpack.c.b16 %v1159, %v1155
      %v1628 = vpack.c.b16 %v1160, %v1156
      %v1629 = vpack.c.b16 %v1161, %v1157
      %v1630 = vpack.c.b16 %v1166, %v1162
      %v1631 = vpack.c.b16 %v1167, %v1163
      %v1632 = vpack.c.b16 %v1168, %v1164
      %v1633 = vpack.c.b16 %v1169, %v1165
      %v1634 = vpack.c.b16 %v1174, %v1170
      %v1635 = vpack.c.b16 %v1175, %v1171
      %v1636 = vpack.c.b16 %v1176, %v1172
      %v1637 = vpack.c.b16 %v1177, %v1173
      %v1638 = vpack.c.b16 %v1182, %v1178
      %v1639 = vpack.c.b16 %v1183, %v1179
      %v1640 = vpack.c.b16 %v1184, %v1180
      %v1641 = vpack.c.b16 %v1185, %v1181
      %v1642 = vpack.c.b16 %v1190, %v1186
      %v1643 = vpack.c.b16 %v1191, %v1187
      %v1644 = vpack.c.b16 %v1192, %v1188
      %v1645 = vpack.c.b16 %v1193, %v1189
      %v1646 = vpack.c.b16 %v1198, %v1194
      %v1647 = vpack.c.b16 %v1199, %v1195
      %v1648 = vpack.c.b16 %v1200, %v1196
      %v1649 = vpack.c.b16 %v1201, %v1197
      %v1650 = vpack.c.b16 %v1206, %v1202
      %v1651 = vpack.c.b16 %v1207, %v1203
      %v1652 = vpack.c.b16 %v1208, %v1204
      %v1653 = vpack.c.b16 %v1209, %v1205
      %v1654 = vpack.c.b16 %v1214, %v1210
      %v1655 = vpack.c.b16 %v1215, %v1211
      %v1656 = vpack.c.b16 %v1216, %v1212
      %v1657 = vpack.c.b16 %v1217, %v1213
      %v1658 = vpack.c.b16 %v1222, %v1218
      %v1659 = vpack.c.b16 %v1223, %v1219
      %v1660 = vpack.c.b16 %v1224, %v1220
      %v1661 = vpack.c.b16 %v1225, %v1221
      %v1662 = vpack.c.b16 %v1230, %v1226
      %v1663 = vpack.c.b16 %v1231, %v1227
      %v1664 = vpack.c.b16 %v1232, %v1228
      %v1665 = vpack.c.b16 %v1233, %v1229
      %v1666 = vpack.c.b16 %v1238, %v1234
      %v1667 = vpack.c.b16 %v1239, %v1235
      %v1668 = vpack.c.b16 %v1240, %v1236
      %v1669 = vpack.c.b16 %v1241, %v1237
      %v1670 = vpack.c.b16 %v1246, %v1242
      %v1671 = vpack.c.b16 %v1247, %v1243
      %v1672 = vpack.c.b16 %v1248, %v1244
      %v1673 = vpack.c.b16 %v1249, %v1245
      %v1674 = vpack.c.b16 %v1254, %v1250
      %v1675 = vpack.c.b16 %v1255, %v1251
      %v1676 = vpack.c.b16 %v1256, %v1252
      %v1677 = vpack.c.b16 %v1257, %v1253
      %v1678 = vpack.c.b16 %v1262, %v1258
      %v1679 = vpack.c.b16 %v1263, %v1259
      %v1680 = vpack.c.b16 %v1264, %v1260
      %v1681 = vpack.c.b16 %v1265, %v1261
      %v1682 = vpack.c.b16 %v1270, %v1266
      %v1683 = vpack.c.b16 %v1271, %v1267
      %v1684 = vpack.c.b16 %v1272, %v1268
      %v1685 = vpack.c.b16 %v1273, %v1269
      %v1686 = vpack.c.b16 %v1278, %v1274
      %v1687 = vpack.c.b16 %v1279, %v1275
      %v1688 = vpack.c.b16 %v1280, %v1276
      %v1689 = vpack.c.b16 %v1281, %v1277
      %v1690 = vpack.c.b16 %v1286, %v1282
      %v1691 = vpack.c.b16 %v1287, %v1283
      %v1692 = vpack.c.b16 %v1288, %v1284
      %v1693 = vpack.c.b16 %v1289, %v1285
      %v1694 = vpack.c.b16 %v1294, %v1290
      %v1695 = vpack.c.b16 %v1295, %v1291
      %v1696 = vpack.c.b16 %v1296, %v1292
      %v1697 = vpack.c.b16 %v1297, %v1293
      %v1698 = vpack.c.b16 %v1302, %v1298
      %v1699 = vpack.c.b16 %v1303, %v1299
      %v1700 = vpack.c.b16 %v1304, %v1300
      %v1701 = vpack.c.b16 %v1305, %v1301
      %v1702 = vpack.c.b16 %v1310, %v1306
      %v1703 = vpack.c.b16 %v1311, %v1307
      %v1704 = vpack.c.b16 %v1312, %v1308
      %v1705 = vpack.c.b16 %v1313, %v1309
      %v1706 = vpack.c.b16 %v1318, %v1314
      %v1707 = vpack.c.b16 %v1319, %v1315
      %v1708 = vpack.c.b16 %v1320, %v1316
      %v1709 = vpack.c.b16 %v1321, %v1317
      %v1710 = vpack.c.b16 %v1326, %v1322
      %v1711 = vpack.c.b16 %v1327, %v1323
      %v1712 = vpack.c.b16 %v1328, %v1324
      %v1713 = vpack.c.b16 %v1329, %v1325
      %v1714 = vpack.c.b16 %v1334, %v1330
      %v1715 = vpack.c.b16 %v1335, %v1331
      %v1716 = vpack.c.b16 %v1336, %v1332
      %v1717 = vpack.c.b16 %v1337, %v1333
      %v1718 = vpack.c.b16 %v1342, %v1338
      %v1719 = vpack.c.b16 %v1343, %v1339
      %v1720 = vpack.c.b16 %v1344, %v1340
      %v1721 = vpack.c.b16 %v1345, %v1341
      %v1722 = vpack.c.b16 %v1350, %v1346
      %v1723 = vpack.c.b16 %v1351, %v1347
      %v1724 = vpack.c.b16 %v1352, %v1348
      %v1725 = vpack.c.b16 %v1353, %v1349
      %v1726 = vpack.c.b16 %v1358, %v1354
      %v1727 = vpack.c.b16 %v1359, %v1355
      %v1728 = vpack.c.b16 %v1360, %v1356
      %v1729 = vpack.c.b16 %v1361, %v1357
      %v1730 = vpack.c.b16 %v1366, %v1362
      %v1731 = vpack.c.b16 %v1367, %v1363
      %v1732 = vpack.c.b16 %v1368, %v1364
      %v1733 = vpack.c.b16 %v1369, %v1365
      %v1734 = vpack.c.b16 %v1374, %v1370
      %v1735 = vpack.c.b16 %v1375, %v1371
      %v1736 = vpack.c.b16 %v1376, %v1372
      %v1737 = vpack.c.b16 %v1377, %v1373
      %v1738 = vpack.c.b16 %v1382, %v1378
      %v1739 = vpack.c.b16 %v1383, %v1379
      %v1740 = vpack.c.b16 %v1384, %v1380
      %v1741 = vpack.c.b16 %v1385, %v1381
      %v1742 = vpack.c.b16 %v1390, %v1386
      %v1743 = vpack.c.b16 %v1391, %v1387
      %v1744 = vpack.c.b16 %v1392, %v1388
      %v1745 = vpack.c.b16 %v1393, %v1389
      %v1746 = vpack.c.b16 %v1398, %v1394
      %v1747 = vpack.c.b16 %v1399, %v1395
      %v1748 = vpack.c.b16 %v1400, %v1396
      %v1749 = vpack.c.b16 %v1401, %v1397
      %v1750 = vpack.c.b16 %v1406, %v1402
      %v1751 = vpack.c.b16 %v1407, %v1403
      %v1752 = vpack.c.b16 %v1408, %v1404
      %v1753 = vpack.c.b16 %v1409, %v1405
      %v1754 = vpack.c.b16 %v1414, %v1410
      %v1755 = vpack.c.b16 %v1415, %v1411
      %v1756 = vpack.c.b16 %v1416, %v1412
      %v1757 = vpack.c.b16 %v1417, %v1413
      %v1758 = vpack.c.b16 %v1422, %v1418
      %v1759 = vpack.c.b16 %v1423, %v1419
      %v1760 = vpack.c.b16 %v1424, %v1420
      %v1761 = vpack.c.b16 %v1425, %v1421
      %v1762 = vpack.c.b16 %v1430, %v1426
      %v1763 = vpack.c.b16 %v1431, %v1427
      %v1764 = vpack.c.b16 %v1432, %v1428
      %v1765 = vpack.c.b16 %v1433, %v1429
      %v1766 = vpack.c.b16 %v1438, %v1434
      %v1767 = vpack.c.b16 %v1439, %v1435
      %v1768 = vpack.c.b16 %v1440, %v1436
      %v1769 = vpack.c.b16 %v1441, %v1437
      %v1770 = vpack.c.b16 %v1446, %v1442
      %v1771 = vpack.c.b16 %v1447, %v1443
      %v1772 = vpack.c.b16 %v1448, %v1444
      %v1773 = vpack.c.b16 %v1449, %v1445
      %v1774 = vpack.c.b16 %v1454, %v1450
      %v1775 = vpack.c.b16 %v1455, %v1451
      %v1776 = vpack.c.b16 %v1456, %v1452
      %v1777 = vpack.c.b16 %v1457, %v1453
      %v1778 = vpack.c.b16 %v1462, %v1458
      %v1779 = vpack.c.b16 %v1463, %v1459
      %v1780 = vpack.c.b16 %v1464, %v1460
      %v1781 = vpack.c.b16 %v1465, %v1461
      %v1782 = vpack.c.b16 %v1470, %v1466
      %v1783 = vpack.c.b16 %v1471, %v1467
      %v1784 = vpack.c.b16 %v1472, %v1468
      %v1785 = vpack.c.b16 %v1473, %v1469
      %v1786 = vpack.c.b16 %v1478, %v1474
      %v1787 = vpack.c.b16 %v1479, %v1475
      %v1788 = vpack.c.b16 %v1480, %v1476
      %v1789 = vpack.c.b16 %v1481, %v1477
      %v1790 = vpack.c.b16 %v1486, %v1482
      %v1791 = vpack.c.b16 %v1487, %v1483
      %v1792 = vpack.c.b16 %v1488, %v1484
      %v1793 = vpack.c.b16 %v1489, %v1485
      %v1794 = vpack.c.b16 %v1494, %v1490
      %v1795 = vpack.c.b16 %v1495, %v1491
      %v1796 = vpack.c.b16 %v1496, %v1492
      %v1797 = vpack.c.b16 %v1497, %v1493
      %v1798 = vpack.c.b16 %v1502, %v1498
      %v1799 = vpack.c.b16 %v1503, %v1499
      %v1800 = vpack.c.b16 %v1504, %v1500
      %v1801 = vpack.c.b16 %v1505, %v1501
      %v1802 = vpack.c.b16 %v1510, %v1506
      %v1803 = vpack.c.b16 %v1511, %v1507
      %v1804 = vpack.c.b16 %v1512, %v1508
      %v1805 = vpack.c.b16 %v1513, %v1509
      %v1806 = vpack.c.b16 %v1518, %v1514
      %v1807 = vpack.c.b16 %v1519, %v1515
      %v1808 = vpack.c.b16 %v1520, %v1516
      %v1809 = vpack.c.b16 %v1521, %v1517
      %v1810 = vpack.c.b16 %v1526, %v1522
      %v1811 = vpack.c.b16 %v1527, %v1523
      %v1812 = vpack.c.b16 %v1528, %v1524
      %v1813 = vpack.c.b16 %v1529, %v1525
      %v1814 = vpack.c.b16 %v1534, %v1530
      %v1815 = vpack.c.b16 %v1535, %v1531
      %v1816 = vpack.c.b16 %v1536, %v1532
      %v1817 = vpack.c.b16 %v1537, %v1533
      %v1818 = vpack.c.b16 %v1542, %v1538
      %v1819 = vpack.c.b16 %v1543, %v1539
      %v1820 = vpack.c.b16 %v1544, %v1540
      %v1821 = vpack.c.b16 %v1545, %v1541
      %v1822 = vpack.c.b16 %v1550, %v1546
      %v1823 = vpack.c.b16 %v1551, %v1547
      %v1824 = vpack.c.b16 %v1552, %v1548
      %v1825 = vpack.c.b16 %v1553, %v1549
      %v1826 = vpack.c.b16 %v1558, %v1554
      %v1827 = vpack.c.b16 %v1559, %v1555
      %v1828 = vpack.c.b16 %v1560, %v1556
      %v1829 = vpack.c.b16 %v1561, %v1557
      %v1830 = vpack.c.b16 %v1566, %v1562
      %v1831 = vpack.c.b16 %v1567, %v1563
      %v1832 = vpack.c.b16 %v1568, %v1564
      %v1833 = vpack.c.b16 %v1569, %v1565
      %v1834 = vpack.c.b16 %v1574, %v1570
      %v1835 = vpack.c.b16 %v1575, %v1571
      %v1836 = vpack.c.b16 %v1576, %v1572
      %v1837 = vpack.c.b16 %v1577, %v1573
      %v1838 = vpack.c.b16 %v1582, %v1578
      %v1839 = vpack.c.b16 %v1583, %v1579
      %v1840 = vpack.c.b16 %v1584, %v1580
      %v1841 = vpack.c.b16 %v1585, %v1581
      %2098 = vmatprep.subr.bf16.mxu0 %v1587
      %2099 = vmatpush1.bf16.msra.mxu0 %v1586
      %2100 = vmatprep.subr.bf16.mxu0 %v1591
      %2101 = vmatpush1.bf16.msra.mxu0 %v1590
      %2102 = vmatprep.subr.bf16.mxu0 %v1595
      %2103 = vmatpush1.bf16.msra.mxu0 %v1594
      %2104 = vmatprep.subr.bf16.mxu0 %v1599
      %2105 = vmatpush1.bf16.msra.mxu0 %v1598
      %2106 = vmatprep.subr.bf16.mxu0 %v1603
      %2107 = vmatpush1.bf16.msra.mxu0 %v1602
      %2108 = vmatprep.subr.bf16.mxu0 %v1607
      %2109 = vmatpush1.bf16.msra.mxu0 %v1606
      %2110 = vmatprep.subr.bf16.mxu0 %v1611
      %2111 = vmatpush1.bf16.msra.mxu0 %v1610
      %2112 = vmatprep.subr.bf16.mxu0 %v1615
      %2113 = vmatpush1.bf16.msra.mxu0 %v1614
      %2114 = vmatprep.subr.bf16.mxu0 %v1619
      %2115 = vmatpush1.bf16.msra.mxu0 %v1618
      %2116 = vmatprep.subr.bf16.mxu0 %v1623
      %2117 = vmatpush1.bf16.msra.mxu0 %v1622
      %2118 = vmatprep.subr.bf16.mxu0 %v1627
      %2119 = vmatpush1.bf16.msra.mxu0 %v1626
      %2120 = vmatprep.subr.bf16.mxu0 %v1631
      %2121 = vmatpush1.bf16.msra.mxu0 %v1630
      %2122 = vmatprep.subr.bf16.mxu0 %v1635
      %2123 = vmatpush1.bf16.msra.mxu0 %v1634
      %2124 = vmatprep.subr.bf16.mxu0 %v1639
      %2125 = vmatpush1.bf16.msra.mxu0 %v1638
      %2126 = vmatprep.subr.bf16.mxu0 %v1643
      %2127 = vmatpush1.bf16.msra.mxu0 %v1642
      %2128 = vmatprep.subr.bf16.mxu0 %v1647
      %2129 = vmatpush1.bf16.msra.mxu0 %v1646
      %2130 = vmatprep.mubr.bf16.mxu0 %v691
      %2131 = vmatmul.mubr.bf16.gmra.mrb[0].mxu0 %v690
      %v2132 = vpop.f32.mrb[0].mxu0
      %v2133 = vadd.f32 0.0, %v2132
      %v2134 = vpop.f32.mrb[0].mxu0
      %v2135 = vadd.f32 0.0, %v2134
      %v2136 = vpop.f32.mrb[0].mxu0
      %v2137 = vadd.f32 0.0, %v2136
      %v2138 = vpop.f32.mrb[0].mxu0
      %v2139 = vadd.f32 0.0, %v2138
      %2140 = vmatprep.mubr.bf16.mxu0 %v699
      %2141 = vmatmul.mubr.bf16.gmra.mrb[0].mxu0 %v698
      %v2142 = vpop.f32.mrb[0].mxu0
      %v2143 = vadd.f32 0.0, %v2142
      %v2144 = vpop.f32.mrb[0].mxu0
      %v2145 = vadd.f32 0.0, %v2144
      %v2146 = vpop.f32.mrb[0].mxu0
      %v2147 = vadd.f32 0.0, %v2146
      %v2148 = vpop.f32.mrb[0].mxu0
      %v2149 = vadd.f32 0.0, %v2148
      %2150 = vmatprep.mubr.bf16.mxu0 %v707
      %2151 = vmatmul.mubr.bf16.gmra.mrb[0].mxu0 %v706
      %v2152 = vpop.f32.mrb[0].mxu0
      %v2153 = vadd.f32 0.0, %v2152
      %v2154 = vpop.f32.mrb[0].mxu0
      %v2155 = vadd.f32 0.0, %v2154
      %v2156 = vpop.f32.mrb[0].mxu0
      %v2157 = vadd.f32 0.0, %v2156
      %v2158 = vpop.f32.mrb[0].mxu0
      %v2159 = vadd.f32 0.0, %v2158
      %2160 = vmatprep.mubr.bf16.mxu0 %v715
      %2161 = vmatmul.mubr.bf16.gmra.mrb[0].mxu0 %v714
      %v2162 = vpop.f32.mrb[0].mxu0
      %v2163 = vadd.f32 0.0, %v2162
      %v2164 = vpop.f32.mrb[0].mxu0
      %v2165 = vadd.f32 0.0, %v2164
      %v2166 = vpop.f32.mrb[0].mxu0
      %v2167 = vadd.f32 0.0, %v2166
      %v2168 = vpop.f32.mrb[0].mxu0
      %v2169 = vadd.f32 0.0, %v2168
      %2170 = vmatprep.mubr.bf16.mxu0 %v723
      %2171 = vmatmul.mubr.bf16.gmra.mrb[0].mxu0 %v722
      %v2172 = vpop.f32.mrb[0].mxu0
      %v2173 = vadd.f32 0.0, %v2172
      %v2174 = vpop.f32.mrb[0].mxu0
      %v2175 = vadd.f32 0.0, %v2174
      %v2176 = vpop.f32.mrb[0].mxu0
      %v2177 = vadd.f32 0.0, %v2176
      %v2178 = vpop.f32.mrb[0].mxu0
      %v2179 = vadd.f32 0.0, %v2178
      %2180 = vmatprep.mubr.bf16.mxu0 %v731
      %2181 = vmatmul.mubr.bf16.gmra.mrb[0].mxu0 %v730
      %v2182 = vpop.f32.mrb[0].mxu0
      %v2183 = vadd.f32 0.0, %v2182
      %v2184 = vpop.f32.mrb[0].mxu0
      %v2185 = vadd.f32 0.0, %v2184
      %v2186 = vpop.f32.mrb[0].mxu0
      %v2187 = vadd.f32 0.0, %v2186
      %v2188 = vpop.f32.mrb[0].mxu0
      %v2189 = vadd.f32 0.0, %v2188
      %2190 = vmatprep.mubr.bf16.mxu0 %v739
      %2191 = vmatmul.mubr.bf16.gmra.mrb[0].mxu0 %v738
      %v2192 = vpop.f32.mrb[0].mxu0
      %v2193 = vadd.f32 0.0, %v2192
      %v2194 = vpop.f32.mrb[0].mxu0
      %v2195 = vadd.f32 0.0, %v2194
      %v2196 = vpop.f32.mrb[0].mxu0
      %v2197 = vadd.f32 0.0, %v2196
      %v2198 = vpop.f32.mrb[0].mxu0
      %v2199 = vadd.f32 0.0, %v2198
      %2200 = vmatprep.mubr.bf16.mxu0 %v747
      %2201 = vmatmul.mubr.bf16.gmra.mrb[0].mxu0 %v746
      %v2202 = vpop.f32.mrb[0].mxu0
      %v2203 = vadd.f32 0.0, %v2202
      %v2204 = vpop.f32.mrb[0].mxu0
      %v2205 = vadd.f32 0.0, %v2204
      %v2206 = vpop.f32.mrb[0].mxu0
      %v2207 = vadd.f32 0.0, %v2206
      %v2208 = vpop.f32.mrb[0].mxu0
      %v2209 = vadd.f32 0.0, %v2208
      %2210 = vdwg.mxu0
      %2211 = vmatprep.subr.bf16.mxu0 %v1651
      %2212 = vmatpush1.bf16.msra.mxu0 %v1650
      %2213 = vmatprep.subr.bf16.mxu0 %v1655
      %2214 = vmatpush1.bf16.msra.mxu0 %v1654
      %2215 = vmatprep.subr.bf16.mxu0 %v1659
      %2216 = vmatpush1.bf16.msra.mxu0 %v1658
      %2217 = vmatprep.subr.bf16.mxu0 %v1663
      %2218 = vmatpush1.bf16.msra.mxu0 %v1662
      %2219 = vmatprep.subr.bf16.mxu0 %v1667
      %2220 = vmatpush1.bf16.msra.mxu0 %v1666
      %2221 = vmatprep.subr.bf16.mxu0 %v1671
      %2222 = vmatpush1.bf16.msra.mxu0 %v1670
      %2223 = vmatprep.subr.bf16.mxu0 %v1675
      %2224 = vmatpush1.bf16.msra.mxu0 %v1674
      %2225 = vmatprep.subr.bf16.mxu0 %v1679
      %2226 = vmatpush1.bf16.msra.mxu0 %v1678
      %2227 = vmatprep.subr.bf16.mxu0 %v1683
      %2228 = vmatpush1.bf16.msra.mxu0 %v1682
      %2229 = vmatprep.subr.bf16.mxu0 %v1687
      %2230 = vmatpush1.bf16.msra.mxu0 %v1686
      %2231 = vmatprep.subr.bf16.mxu0 %v1691
      %2232 = vmatpush1.bf16.msra.mxu0 %v1690
      %2233 = vmatprep.subr.bf16.mxu0 %v1695
      %2234 = vmatpush1.bf16.msra.mxu0 %v1694
      %2235 = vmatprep.subr.bf16.mxu0 %v1699
      %2236 = vmatpush1.bf16.msra.mxu0 %v1698
      %2237 = vmatprep.subr.bf16.mxu0 %v1703
      %2238 = vmatpush1.bf16.msra.mxu0 %v1702
      %2239 = vmatprep.subr.bf16.mxu0 %v1707
      %2240 = vmatpush1.bf16.msra.mxu0 %v1706
      %2241 = vmatprep.subr.bf16.mxu0 %v1711
      %2242 = vmatpush1.bf16.msra.mxu0 %v1710
      %2243 = vmatprep.mubr.bf16.mxu0 %v693
      %2244 = vmatmul.mubr.bf16.gmra.mrb[0].mxu0 %v692
      %v2245 = vpop.f32.mrb[0].mxu0
      %v2246 = vadd.f32 %v2133, %v2245
      %v2247 = vpop.f32.mrb[0].mxu0
      %v2248 = vadd.f32 %v2135, %v2247
      %v2249 = vpop.f32.mrb[0].mxu0
      %v2250 = vadd.f32 %v2137, %v2249
      %v2251 = vpop.f32.mrb[0].mxu0
      %v2252 = vadd.f32 %v2139, %v2251
      %2253 = vmatprep.mubr.bf16.mxu0 %v701
      %2254 = vmatmul.mubr.bf16.gmra.mrb[0].mxu0 %v700
      %v2255 = vpop.f32.mrb[0].mxu0
      %v2256 = vadd.f32 %v2143, %v2255
      %v2257 = vpop.f32.mrb[0].mxu0
      %v2258 = vadd.f32 %v2145, %v2257
      %v2259 = vpop.f32.mrb[0].mxu0
      %v2260 = vadd.f32 %v2147, %v2259
      %v2261 = vpop.f32.mrb[0].mxu0
      %v2262 = vadd.f32 %v2149, %v2261
      %2263 = vmatprep.mubr.bf16.mxu0 %v709
      %2264 = vmatmul.mubr.bf16.gmra.mrb[0].mxu0 %v708
      %v2265 = vpop.f32.mrb[0].mxu0
      %v2266 = vadd.f32 %v2153, %v2265
      %v2267 = vpop.f32.mrb[0].mxu0
      %v2268 = vadd.f32 %v2155, %v2267
      %v2269 = vpop.f32.mrb[0].mxu0
      %v2270 = vadd.f32 %v2157, %v2269
      %v2271 = vpop.f32.mrb[0].mxu0
      %v2272 = vadd.f32 %v2159, %v2271
      %2273 = vmatprep.mubr.bf16.mxu0 %v717
      %2274 = vmatmul.mubr.bf16.gmra.mrb[0].mxu0 %v716
      %v2275 = vpop.f32.mrb[0].mxu0
      %v2276 = vadd.f32 %v2163, %v2275
      %v2277 = vpop.f32.mrb[0].mxu0
      %v2278 = vadd.f32 %v2165, %v2277
      %v2279 = vpop.f32.mrb[0].mxu0
      %v2280 = vadd.f32 %v2167, %v2279
      %v2281 = vpop.f32.mrb[0].mxu0
      %v2282 = vadd.f32 %v2169, %v2281
      %2283 = vmatprep.mubr.bf16.mxu0 %v725
      %2284 = vmatmul.mubr.bf16.gmra.mrb[0].mxu0 %v724
      %v2285 = vpop.f32.mrb[0].mxu0
      %v2286 = vadd.f32 %v2173, %v2285
      %v2287 = vpop.f32.mrb[0].mxu0
      %v2288 = vadd.f32 %v2175, %v2287
      %v2289 = vpop.f32.mrb[0].mxu0
      %v2290 = vadd.f32 %v2177, %v2289
      %v2291 = vpop.f32.mrb[0].mxu0
      %v2292 = vadd.f32 %v2179, %v2291
      %2293 = vmatprep.mubr.bf16.mxu0 %v733
      %2294 = vmatmul.mubr.bf16.gmra.mrb[0].mxu0 %v732
      %v2295 = vpop.f32.mrb[0].mxu0
      %v2296 = vadd.f32 %v2183, %v2295
      %v2297 = vpop.f32.mrb[0].mxu0
      %v2298 = vadd.f32 %v2185, %v2297
      %v2299 = vpop.f32.mrb[0].mxu0
      %v2300 = vadd.f32 %v2187, %v2299
      %v2301 = vpop.f32.mrb[0].mxu0
      %v2302 = vadd.f32 %v2189, %v2301
      %2303 = vmatprep.mubr.bf16.mxu0 %v741
      %2304 = vmatmul.mubr.bf16.gmra.mrb[0].mxu0 %v740
      %v2305 = vpop.f32.mrb[0].mxu0
      %v2306 = vadd.f32 %v2193, %v2305
      %v2307 = vpop.f32.mrb[0].mxu0
      %v2308 = vadd.f32 %v2195, %v2307
      %v2309 = vpop.f32.mrb[0].mxu0
      %v2310 = vadd.f32 %v2197, %v2309
      %v2311 = vpop.f32.mrb[0].mxu0
      %v2312 = vadd.f32 %v2199, %v2311
      %2313 = vmatprep.mubr.bf16.mxu0 %v749
      %2314 = vmatmul.mubr.bf16.gmra.mrb[0].mxu0 %v748
      %v2315 = vpop.f32.mrb[0].mxu0
      %v2316 = vadd.f32 %v2203, %v2315
      %v2317 = vpop.f32.mrb[0].mxu0
      %v2318 = vadd.f32 %v2205, %v2317
      %v2319 = vpop.f32.mrb[0].mxu0
      %v2320 = vadd.f32 %v2207, %v2319
      %v2321 = vpop.f32.mrb[0].mxu0
      %v2322 = vadd.f32 %v2209, %v2321
      %2323 = vdwg.mxu0
      %2324 = vmatprep.subr.bf16.mxu0 %v1715
      %2325 = vmatpush1.bf16.msra.mxu0 %v1714
      %2326 = vmatprep.subr.bf16.mxu0 %v1719
      %2327 = vmatpush1.bf16.msra.mxu0 %v1718
      %2328 = vmatprep.subr.bf16.mxu0 %v1723
      %2329 = vmatpush1.bf16.msra.mxu0 %v1722
      %2330 = vmatprep.subr.bf16.mxu0 %v1727
      %2331 = vmatpush1.bf16.msra.mxu0 %v1726
      %2332 = vmatprep.subr.bf16.mxu0 %v1731
      %2333 = vmatpush1.bf16.msra.mxu0 %v1730
      %2334 = vmatprep.subr.bf16.mxu0 %v1735
      %2335 = vmatpush1.bf16.msra.mxu0 %v1734
      %2336 = vmatprep.subr.bf16.mxu0 %v1739
      %2337 = vmatpush1.bf16.msra.mxu0 %v1738
      %2338 = vmatprep.subr.bf16.mxu0 %v1743
      %2339 = vmatpush1.bf16.msra.mxu0 %v1742
      %2340 = vmatprep.subr.bf16.mxu0 %v1747
      %2341 = vmatpush1.bf16.msra.mxu0 %v1746
      %2342 = vmatprep.subr.bf16.mxu0 %v1751
      %2343 = vmatpush1.bf16.msra.mxu0 %v1750
      %2344 = vmatprep.subr.bf16.mxu0 %v1755
      %2345 = vmatpush1.bf16.msra.mxu0 %v1754
      %2346 = vmatprep.subr.bf16.mxu0 %v1759
      %2347 = vmatpush1.bf16.msra.mxu0 %v1758
      %2348 = vmatprep.subr.bf16.mxu0 %v1763
      %2349 = vmatpush1.bf16.msra.mxu0 %v1762
      %2350 = vmatprep.subr.bf16.mxu0 %v1767
      %2351 = vmatpush1.bf16.msra.mxu0 %v1766
      %2352 = vmatprep.subr.bf16.mxu0 %v1771
      %2353 = vmatpush1.bf16.msra.mxu0 %v1770
      %2354 = vmatprep.subr.bf16.mxu0 %v1775
      %2355 = vmatpush1.bf16.msra.mxu0 %v1774
      %2356 = vmatprep.mubr.bf16.mxu0 %v695
      %2357 = vmatmul.mubr.bf16.gmra.mrb[0].mxu0 %v694
      %v2358 = vpop.f32.mrb[0].mxu0
      %v2359 = vadd.f32 %v2246, %v2358
      %v2360 = vpop.f32.mrb[0].mxu0
      %v2361 = vadd.f32 %v2248, %v2360
      %v2362 = vpop.f32.mrb[0].mxu0
      %v2363 = vadd.f32 %v2250, %v2362
      %v2364 = vpop.f32.mrb[0].mxu0
      %v2365 = vadd.f32 %v2252, %v2364
      %2366 = vmatprep.mubr.bf16.mxu0 %v703
      %2367 = vmatmul.mubr.bf16.gmra.mrb[0].mxu0 %v702
      %v2368 = vpop.f32.mrb[0].mxu0
      %v2369 = vadd.f32 %v2256, %v2368
      %v2370 = vpop.f32.mrb[0].mxu0
      %v2371 = vadd.f32 %v2258, %v2370
      %v2372 = vpop.f32.mrb[0].mxu0
      %v2373 = vadd.f32 %v2260, %v2372
      %v2374 = vpop.f32.mrb[0].mxu0
      %v2375 = vadd.f32 %v2262, %v2374
      %2376 = vmatprep.mubr.bf16.mxu0 %v711
      %2377 = vmatmul.mubr.bf16.gmra.mrb[0].mxu0 %v710
      %v2378 = vpop.f32.mrb[0].mxu0
      %v2379 = vadd.f32 %v2266, %v2378
      %v2380 = vpop.f32.mrb[0].mxu0
      %v2381 = vadd.f32 %v2268, %v2380
      %v2382 = vpop.f32.mrb[0].mxu0
      %v2383 = vadd.f32 %v2270, %v2382
      %v2384 = vpop.f32.mrb[0].mxu0
      %v2385 = vadd.f32 %v2272, %v2384
      %2386 = vmatprep.mubr.bf16.mxu0 %v719
      %2387 = vmatmul.mubr.bf16.gmra.mrb[0].mxu0 %v718
      %v2388 = vpop.f32.mrb[0].mxu0
      %v2389 = vadd.f32 %v2276, %v2388
      %v2390 = vpop.f32.mrb[0].mxu0
      %v2391 = vadd.f32 %v2278, %v2390
      %v2392 = vpop.f32.mrb[0].mxu0
      %v2393 = vadd.f32 %v2280, %v2392
      %v2394 = vpop.f32.mrb[0].mxu0
      %v2395 = vadd.f32 %v2282, %v2394
      %2396 = vmatprep.mubr.bf16.mxu0 %v727
      %2397 = vmatmul.mubr.bf16.gmra.mrb[0].mxu0 %v726
      %v2398 = vpop.f32.mrb[0].mxu0
      %v2399 = vadd.f32 %v2286, %v2398
      %v2400 = vpop.f32.mrb[0].mxu0
      %v2401 = vadd.f32 %v2288, %v2400
      %v2402 = vpop.f32.mrb[0].mxu0
      %v2403 = vadd.f32 %v2290, %v2402
      %v2404 = vpop.f32.mrb[0].mxu0
      %v2405 = vadd.f32 %v2292, %v2404
      %2406 = vmatprep.mubr.bf16.mxu0 %v735
      %2407 = vmatmul.mubr.bf16.gmra.mrb[0].mxu0 %v734
      %v2408 = vpop.f32.mrb[0].mxu0
      %v2409 = vadd.f32 %v2296, %v2408
      %v2410 = vpop.f32.mrb[0].mxu0
      %v2411 = vadd.f32 %v2298, %v2410
      %v2412 = vpop.f32.mrb[0].mxu0
      %v2413 = vadd.f32 %v2300, %v2412
      %v2414 = vpop.f32.mrb[0].mxu0
      %v2415 = vadd.f32 %v2302, %v2414
      %2416 = vmatprep.mubr.bf16.mxu0 %v743
      %2417 = vmatmul.mubr.bf16.gmra.mrb[0].mxu0 %v742
      %v2418 = vpop.f32.mrb[0].mxu0
      %v2419 = vadd.f32 %v2306, %v2418
      %v2420 = vpop.f32.mrb[0].mxu0
      %v2421 = vadd.f32 %v2308, %v2420
      %v2422 = vpop.f32.mrb[0].mxu0
      %v2423 = vadd.f32 %v2310, %v2422
      %v2424 = vpop.f32.mrb[0].mxu0
      %v2425 = vadd.f32 %v2312, %v2424
      %2426 = vmatprep.mubr.bf16.mxu0 %v751
      %2427 = vmatmul.mubr.bf16.gmra.mrb[0].mxu0 %v750
      %v2428 = vpop.f32.mrb[0].mxu0
      %v2429 = vadd.f32 %v2316, %v2428
      %v2430 = vpop.f32.mrb[0].mxu0
      %v2431 = vadd.f32 %v2318, %v2430
      %v2432 = vpop.f32.mrb[0].mxu0
      %v2433 = vadd.f32 %v2320, %v2432
      %v2434 = vpop.f32.mrb[0].mxu0
      %v2435 = vadd.f32 %v2322, %v2434
      %2436 = vdwg.mxu0
      %2437 = vmatprep.subr.bf16.mxu0 %v1779
      %2438 = vmatpush1.bf16.msra.mxu0 %v1778
      %2439 = vmatprep.subr.bf16.mxu0 %v1783
      %2440 = vmatpush1.bf16.msra.mxu0 %v1782
      %2441 = vmatprep.subr.bf16.mxu0 %v1787
      %2442 = vmatpush1.bf16.msra.mxu0 %v1786
      %2443 = vmatprep.subr.bf16.mxu0 %v1791
      %2444 = vmatpush1.bf16.msra.mxu0 %v1790
      %2445 = vmatprep.subr.bf16.mxu0 %v1795
      %2446 = vmatpush1.bf16.msra.mxu0 %v1794
      %2447 = vmatprep.subr.bf16.mxu0 %v1799
      %2448 = vmatpush1.bf16.msra.mxu0 %v1798
      %2449 = vmatprep.subr.bf16.mxu0 %v1803
      %2450 = vmatpush1.bf16.msra.mxu0 %v1802
      %2451 = vmatprep.subr.bf16.mxu0 %v1807
      %2452 = vmatpush1.bf16.msra.mxu0 %v1806
      %2453 = vmatprep.subr.bf16.mxu0 %v1811
      %2454 = vmatpush1.bf16.msra.mxu0 %v1810
      %2455 = vmatprep.subr.bf16.mxu0 %v1815
      %2456 = vmatpush1.bf16.msra.mxu0 %v1814
      %2457 = vmatprep.subr.bf16.mxu0 %v1819
      %2458 = vmatpush1.bf16.msra.mxu0 %v1818
      %2459 = vmatprep.subr.bf16.mxu0 %v1823
      %2460 = vmatpush1.bf16.msra.mxu0 %v1822
      %2461 = vmatprep.subr.bf16.mxu0 %v1827
      %2462 = vmatpush1.bf16.msra.mxu0 %v1826
      %2463 = vmatprep.subr.bf16.mxu0 %v1831
      %2464 = vmatpush1.bf16.msra.mxu0 %v1830
      %2465 = vmatprep.subr.bf16.mxu0 %v1835
      %2466 = vmatpush1.bf16.msra.mxu0 %v1834
      %2467 = vmatprep.subr.bf16.mxu0 %v1839
      %2468 = vmatpush1.bf16.msra.mxu0 %v1838
      %2469 = vmatprep.mubr.bf16.mxu0 %v697
      %2470 = vmatmul.mubr.bf16.gmra.mrb[0].mxu0 %v696
      %v2471 = vpop.f32.mrb[0].mxu0
      %v2472 = vadd.f32 %v2359, %v2471
      %v2473 = vpop.f32.mrb[0].mxu0
      %v2474 = vadd.f32 %v2361, %v2473
      %v2475 = vpop.f32.mrb[0].mxu0
      %v2476 = vadd.f32 %v2363, %v2475
      %v2477 = vpop.f32.mrb[0].mxu0
      %v2478 = vadd.f32 %v2365, %v2477
      %2479 = vmatprep.mubr.bf16.mxu0 %v705
      %2480 = vmatmul.mubr.bf16.gmra.mrb[0].mxu0 %v704
      %v2481 = vpop.f32.mrb[0].mxu0
      %v2482 = vadd.f32 %v2369, %v2481
      %v2483 = vpop.f32.mrb[0].mxu0
      %v2484 = vadd.f32 %v2371, %v2483
      %v2485 = vpop.f32.mrb[0].mxu0
      %v2486 = vadd.f32 %v2373, %v2485
      %v2487 = vpop.f32.mrb[0].mxu0
      %v2488 = vadd.f32 %v2375, %v2487
      %2489 = vmatprep.mubr.bf16.mxu0 %v713
      %2490 = vmatmul.mubr.bf16.gmra.mrb[0].mxu0 %v712
      %v2491 = vpop.f32.mrb[0].mxu0
      %v2492 = vadd.f32 %v2379, %v2491
      %v2493 = vpop.f32.mrb[0].mxu0
      %v2494 = vadd.f32 %v2381, %v2493
      %v2495 = vpop.f32.mrb[0].mxu0
      %v2496 = vadd.f32 %v2383, %v2495
      %v2497 = vpop.f32.mrb[0].mxu0
      %v2498 = vadd.f32 %v2385, %v2497
      %2499 = vmatprep.mubr.bf16.mxu0 %v721
      %2500 = vmatmul.mubr.bf16.gmra.mrb[0].mxu0 %v720
      %v2501 = vpop.f32.mrb[0].mxu0
      %v2502 = vadd.f32 %v2389, %v2501
      %v2503 = vpop.f32.mrb[0].mxu0
      %v2504 = vadd.f32 %v2391, %v2503
      %v2505 = vpop.f32.mrb[0].mxu0
      %v2506 = vadd.f32 %v2393, %v2505
      %v2507 = vpop.f32.mrb[0].mxu0
      %v2508 = vadd.f32 %v2395, %v2507
      %2509 = vmatprep.mubr.bf16.mxu0 %v729
      %2510 = vmatmul.mubr.bf16.gmra.mrb[0].mxu0 %v728
      %v2511 = vpop.f32.mrb[0].mxu0
      %v2512 = vadd.f32 %v2399, %v2511
      %v2513 = vpop.f32.mrb[0].mxu0
      %v2514 = vadd.f32 %v2401, %v2513
      %v2515 = vpop.f32.mrb[0].mxu0
      %v2516 = vadd.f32 %v2403, %v2515
      %v2517 = vpop.f32.mrb[0].mxu0
      %v2518 = vadd.f32 %v2405, %v2517
      %2519 = vmatprep.mubr.bf16.mxu0 %v737
      %2520 = vmatmul.mubr.bf16.gmra.mrb[0].mxu0 %v736
      %v2521 = vpop.f32.mrb[0].mxu0
      %v2522 = vadd.f32 %v2409, %v2521
      %v2523 = vpop.f32.mrb[0].mxu0
      %v2524 = vadd.f32 %v2411, %v2523
      %v2525 = vpop.f32.mrb[0].mxu0
      %v2526 = vadd.f32 %v2413, %v2525
      %v2527 = vpop.f32.mrb[0].mxu0
      %v2528 = vadd.f32 %v2415, %v2527
      %2529 = vmatprep.mubr.bf16.mxu0 %v745
      %2530 = vmatmul.mubr.bf16.gmra.mrb[0].mxu0 %v744
      %v2531 = vpop.f32.mrb[0].mxu0
      %v2532 = vadd.f32 %v2419, %v2531
      %v2533 = vpop.f32.mrb[0].mxu0
      %v2534 = vadd.f32 %v2421, %v2533
      %v2535 = vpop.f32.mrb[0].mxu0
      %v2536 = vadd.f32 %v2423, %v2535
      %v2537 = vpop.f32.mrb[0].mxu0
      %v2538 = vadd.f32 %v2425, %v2537
      %2539 = vmatprep.mubr.bf16.mxu0 %v753
      %2540 = vmatmul.mubr.bf16.gmra.mrb[0].mxu0 %v752
      %v2541 = vpop.f32.mrb[0].mxu0
      %v2542 = vadd.f32 %v2429, %v2541
      %v2543 = vpop.f32.mrb[0].mxu0
      %v2544 = vadd.f32 %v2431, %v2543
      %v2545 = vpop.f32.mrb[0].mxu0
      %v2546 = vadd.f32 %v2433, %v2545
      %v2547 = vpop.f32.mrb[0].mxu0
      %v2548 = vadd.f32 %v2435, %v2547
      %2549 = vdwg.mxu0
      %2550 = vmatprep.subr.bf16.mxu0 %v1589
      %2551 = vmatpush1.bf16.msra.mxu0 %v1588
      %2552 = vmatprep.subr.bf16.mxu0 %v1593
      %2553 = vmatpush1.bf16.msra.mxu0 %v1592
      %2554 = vmatprep.subr.bf16.mxu0 %v1597
      %2555 = vmatpush1.bf16.msra.mxu0 %v1596
      %2556 = vmatprep.subr.bf16.mxu0 %v1601
      %2557 = vmatpush1.bf16.msra.mxu0 %v1600
      %2558 = vmatprep.subr.bf16.mxu0 %v1605
      %2559 = vmatpush1.bf16.msra.mxu0 %v1604
      %2560 = vmatprep.subr.bf16.mxu0 %v1609
      %2561 = vmatpush1.bf16.msra.mxu0 %v1608
      %2562 = vmatprep.subr.bf16.mxu0 %v1613
      %2563 = vmatpush1.bf16.msra.mxu0 %v1612
      %2564 = vmatprep.subr.bf16.mxu0 %v1617
      %2565 = vmatpush1.bf16.msra.mxu0 %v1616
      %2566 = vmatprep.subr.bf16.mxu0 %v1621
      %2567 = vmatpush1.bf16.msra.mxu0 %v1620
      %2568 = vmatprep.subr.bf16.mxu0 %v1625
      %2569 = vmatpush1.bf16.msra.mxu0 %v1624
      %2570 = vmatprep.subr.bf16.mxu0 %v1629
      %2571 = vmatpush1.bf16.msra.mxu0 %v1628
      %2572 = vmatprep.subr.bf16.mxu0 %v1633
      %2573 = vmatpush1.bf16.msra.mxu0 %v1632
      %2574 = vmatprep.subr.bf16.mxu0 %v1637
      %2575 = vmatpush1.bf16.msra.mxu0 %v1636
      %2576 = vmatprep.subr.bf16.mxu0 %v1641
      %2577 = vmatpush1.bf16.msra.mxu0 %v1640
      %2578 = vmatprep.subr.bf16.mxu0 %v1645
      %2579 = vmatpush1.bf16.msra.mxu0 %v1644
      %2580 = vmatprep.subr.bf16.mxu0 %v1649
      %2581 = vmatpush1.bf16.msra.mxu0 %v1648
      %2582 = vmatprep.mubr.bf16.mxu0 %v691
      %2583 = vmatmul.mubr.bf16.gmra.mrb[0].mxu0 %v690
      %v2584 = vpop.f32.mrb[0].mxu0
      %v2585 = vadd.f32 0.0, %v2584
      %v2586 = vpop.f32.mrb[0].mxu0
      %v2587 = vadd.f32 0.0, %v2586
      %v2588 = vpop.f32.mrb[0].mxu0
      %v2589 = vadd.f32 0.0, %v2588
      %v2590 = vpop.f32.mrb[0].mxu0
      %v2591 = vadd.f32 0.0, %v2590
      %2592 = vmatprep.mubr.bf16.mxu0 %v699
      %2593 = vmatmul.mubr.bf16.gmra.mrb[0].mxu0 %v698
      %v2594 = vpop.f32.mrb[0].mxu0
      %v2595 = vadd.f32 0.0, %v2594
      %v2596 = vpop.f32.mrb[0].mxu0
      %v2597 = vadd.f32 0.0, %v2596
      %v2598 = vpop.f32.mrb[0].mxu0
      %v2599 = vadd.f32 0.0, %v2598
      %v2600 = vpop.f32.mrb[0].mxu0
      %v2601 = vadd.f32 0.0, %v2600
      %2602 = vmatprep.mubr.bf16.mxu0 %v707
      %2603 = vmatmul.mubr.bf16.gmra.mrb[0].mxu0 %v706
      %v2604 = vpop.f32.mrb[0].mxu0
      %v2605 = vadd.f32 0.0, %v2604
      %v2606 = vpop.f32.mrb[0].mxu0
      %v2607 = vadd.f32 0.0, %v2606
      %v2608 = vpop.f32.mrb[0].mxu0
      %v2609 = vadd.f32 0.0, %v2608
      %v2610 = vpop.f32.mrb[0].mxu0
      %v2611 = vadd.f32 0.0, %v2610
      %2612 = vmatprep.mubr.bf16.mxu0 %v715
      %2613 = vmatmul.mubr.bf16.gmra.mrb[0].mxu0 %v714
      %v2614 = vpop.f32.mrb[0].mxu0
      %v2615 = vadd.f32 0.0, %v2614
      %v2616 = vpop.f32.mrb[0].mxu0
      %v2617 = vadd.f32 0.0, %v2616
      %v2618 = vpop.f32.mrb[0].mxu0
      %v2619 = vadd.f32 0.0, %v2618
      %v2620 = vpop.f32.mrb[0].mxu0
      %v2621 = vadd.f32 0.0, %v2620
      %2622 = vmatprep.mubr.bf16.mxu0 %v723
      %2623 = vmatmul.mubr.bf16.gmra.mrb[0].mxu0 %v722
      %v2624 = vpop.f32.mrb[0].mxu0
      %v2625 = vadd.f32 0.0, %v2624
      %v2626 = vpop.f32.mrb[0].mxu0
      %v2627 = vadd.f32 0.0, %v2626
      %v2628 = vpop.f32.mrb[0].mxu0
      %v2629 = vadd.f32 0.0, %v2628
      %v2630 = vpop.f32.mrb[0].mxu0
      %v2631 = vadd.f32 0.0, %v2630
      %2632 = vmatprep.mubr.bf16.mxu0 %v731
      %2633 = vmatmul.mubr.bf16.gmra.mrb[0].mxu0 %v730
      %v2634 = vpop.f32.mrb[0].mxu0
      %v2635 = vadd.f32 0.0, %v2634
      %v2636 = vpop.f32.mrb[0].mxu0
      %v2637 = vadd.f32 0.0, %v2636
      %v2638 = vpop.f32.mrb[0].mxu0
      %v2639 = vadd.f32 0.0, %v2638
      %v2640 = vpop.f32.mrb[0].mxu0
      %v2641 = vadd.f32 0.0, %v2640
      %2642 = vmatprep.mubr.bf16.mxu0 %v739
      %2643 = vmatmul.mubr.bf16.gmra.mrb[0].mxu0 %v738
      %v2644 = vpop.f32.mrb[0].mxu0
      %v2645 = vadd.f32 0.0, %v2644
      %v2646 = vpop.f32.mrb[0].mxu0
      %v2647 = vadd.f32 0.0, %v2646
      %v2648 = vpop.f32.mrb[0].mxu0
      %v2649 = vadd.f32 0.0, %v2648
      %v2650 = vpop.f32.mrb[0].mxu0
      %v2651 = vadd.f32 0.0, %v2650
      %2652 = vmatprep.mubr.bf16.mxu0 %v747
      %2653 = vmatmul.mubr.bf16.gmra.mrb[0].mxu0 %v746
      %v2654 = vpop.f32.mrb[0].mxu0
      %v2655 = vadd.f32 0.0, %v2654
      %v2656 = vpop.f32.mrb[0].mxu0
      %v2657 = vadd.f32 0.0, %v2656
      %v2658 = vpop.f32.mrb[0].mxu0
      %v2659 = vadd.f32 0.0, %v2658
      %v2660 = vpop.f32.mrb[0].mxu0
      %v2661 = vadd.f32 0.0, %v2660
      %2662 = vdwg.mxu0
      %2663 = vmatprep.subr.bf16.mxu0 %v1653
      %2664 = vmatpush1.bf16.msra.mxu0 %v1652
      %2665 = vmatprep.subr.bf16.mxu0 %v1657
      %2666 = vmatpush1.bf16.msra.mxu0 %v1656
      %2667 = vmatprep.subr.bf16.mxu0 %v1661
      %2668 = vmatpush1.bf16.msra.mxu0 %v1660
      %2669 = vmatprep.subr.bf16.mxu0 %v1665
      %2670 = vmatpush1.bf16.msra.mxu0 %v1664
      %2671 = vmatprep.subr.bf16.mxu0 %v1669
      %2672 = vmatpush1.bf16.msra.mxu0 %v1668
      %2673 = vmatprep.subr.bf16.mxu0 %v1673
      %2674 = vmatpush1.bf16.msra.mxu0 %v1672
      %2675 = vmatprep.subr.bf16.mxu0 %v1677
      %2676 = vmatpush1.bf16.msra.mxu0 %v1676
      %2677 = vmatprep.subr.bf16.mxu0 %v1681
      %2678 = vmatpush1.bf16.msra.mxu0 %v1680
      %2679 = vmatprep.subr.bf16.mxu0 %v1685
      %2680 = vmatpush1.bf16.msra.mxu0 %v1684
      %2681 = vmatprep.subr.bf16.mxu0 %v1689
      %2682 = vmatpush1.bf16.msra.mxu0 %v1688
      %2683 = vmatprep.subr.bf16.mxu0 %v1693
      %2684 = vmatpush1.bf16.msra.mxu0 %v1692
      %2685 = vmatprep.subr.bf16.mxu0 %v1697
      %2686 = vmatpush1.bf16.msra.mxu0 %v1696
      %2687 = vmatprep.subr.bf16.mxu0 %v1701
      %2688 = vmatpush1.bf16.msra.mxu0 %v1700
      %2689 = vmatprep.subr.bf16.mxu0 %v1705
      %2690 = vmatpush1.bf16.msra.mxu0 %v1704
      %2691 = vmatprep.subr.bf16.mxu0 %v1709
      %2692 = vmatpush1.bf16.msra.mxu0 %v1708
      %2693 = vmatprep.subr.bf16.mxu0 %v1713
      %2694 = vmatpush1.bf16.msra.mxu0 %v1712
      %2695 = vmatprep.mubr.bf16.mxu0 %v693
      %2696 = vmatmul.mubr.bf16.gmra.mrb[0].mxu0 %v692
      %v2697 = vpop.f32.mrb[0].mxu0
      %v2698 = vadd.f32 %v2585, %v2697
      %v2699 = vpop.f32.mrb[0].mxu0
      %v2700 = vadd.f32 %v2587, %v2699
      %v2701 = vpop.f32.mrb[0].mxu0
      %v2702 = vadd.f32 %v2589, %v2701
      %v2703 = vpop.f32.mrb[0].mxu0
      %v2704 = vadd.f32 %v2591, %v2703
      %2705 = vmatprep.mubr.bf16.mxu0 %v701
      %2706 = vmatmul.mubr.bf16.gmra.mrb[0].mxu0 %v700
      %v2707 = vpop.f32.mrb[0].mxu0
      %v2708 = vadd.f32 %v2595, %v2707
      %v2709 = vpop.f32.mrb[0].mxu0
      %v2710 = vadd.f32 %v2597, %v2709
      %v2711 = vpop.f32.mrb[0].mxu0
      %v2712 = vadd.f32 %v2599, %v2711
      %v2713 = vpop.f32.mrb[0].mxu0
      %v2714 = vadd.f32 %v2601, %v2713
      %2715 = vmatprep.mubr.bf16.mxu0 %v709
      %2716 = vmatmul.mubr.bf16.gmra.mrb[0].mxu0 %v708
      %v2717 = vpop.f32.mrb[0].mxu0
      %v2718 = vadd.f32 %v2605, %v2717
      %v2719 = vpop.f32.mrb[0].mxu0
      %v2720 = vadd.f32 %v2607, %v2719
      %v2721 = vpop.f32.mrb[0].mxu0
      %v2722 = vadd.f32 %v2609, %v2721
      %v2723 = vpop.f32.mrb[0].mxu0
      %v2724 = vadd.f32 %v2611, %v2723
      %2725 = vmatprep.mubr.bf16.mxu0 %v717
      %2726 = vmatmul.mubr.bf16.gmra.mrb[0].mxu0 %v716
      %v2727 = vpop.f32.mrb[0].mxu0
      %v2728 = vadd.f32 %v2615, %v2727
      %v2729 = vpop.f32.mrb[0].mxu0
      %v2730 = vadd.f32 %v2617, %v2729
      %v2731 = vpop.f32.mrb[0].mxu0
      %v2732 = vadd.f32 %v2619, %v2731
      %v2733 = vpop.f32.mrb[0].mxu0
      %v2734 = vadd.f32 %v2621, %v2733
      %2735 = vmatprep.mubr.bf16.mxu0 %v725
      %2736 = vmatmul.mubr.bf16.gmra.mrb[0].mxu0 %v724
      %v2737 = vpop.f32.mrb[0].mxu0
      %v2738 = vadd.f32 %v2625, %v2737
      %v2739 = vpop.f32.mrb[0].mxu0
      %v2740 = vadd.f32 %v2627, %v2739
      %v2741 = vpop.f32.mrb[0].mxu0
      %v2742 = vadd.f32 %v2629, %v2741
      %v2743 = vpop.f32.mrb[0].mxu0
      %v2744 = vadd.f32 %v2631, %v2743
      %2745 = vmatprep.mubr.bf16.mxu0 %v733
      %2746 = vmatmul.mubr.bf16.gmra.mrb[0].mxu0 %v732
      %v2747 = vpop.f32.mrb[0].mxu0
      %v2748 = vadd.f32 %v2635, %v2747
      %v2749 = vpop.f32.mrb[0].mxu0
      %v2750 = vadd.f32 %v2637, %v2749
      %v2751 = vpop.f32.mrb[0].mxu0
      %v2752 = vadd.f32 %v2639, %v2751
      %v2753 = vpop.f32.mrb[0].mxu0
      %v2754 = vadd.f32 %v2641, %v2753
      %2755 = vmatprep.mubr.bf16.mxu0 %v741
      %2756 = vmatmul.mubr.bf16.gmra.mrb[0].mxu0 %v740
      %v2757 = vpop.f32.mrb[0].mxu0
      %v2758 = vadd.f32 %v2645, %v2757
      %v2759 = vpop.f32.mrb[0].mxu0
      %v2760 = vadd.f32 %v2647, %v2759
      %v2761 = vpop.f32.mrb[0].mxu0
      %v2762 = vadd.f32 %v2649, %v2761
      %v2763 = vpop.f32.mrb[0].mxu0
      %v2764 = vadd.f32 %v2651, %v2763
      %2765 = vmatprep.mubr.bf16.mxu0 %v749
      %2766 = vmatmul.mubr.bf16.gmra.mrb[0].mxu0 %v748
      %v2767 = vpop.f32.mrb[0].mxu0
      %v2768 = vadd.f32 %v2655, %v2767
      %v2769 = vpop.f32.mrb[0].mxu0
      %v2770 = vadd.f32 %v2657, %v2769
      %v2771 = vpop.f32.mrb[0].mxu0
      %v2772 = vadd.f32 %v2659, %v2771
      %v2773 = vpop.f32.mrb[0].mxu0
      %v2774 = vadd.f32 %v2661, %v2773
      %2775 = vdwg.mxu0
      %2776 = vmatprep.subr.bf16.mxu0 %v1717
      %2777 = vmatpush1.bf16.msra.mxu0 %v1716
      %2778 = vmatprep.subr.bf16.mxu0 %v1721
      %2779 = vmatpush1.bf16.msra.mxu0 %v1720
      %2780 = vmatprep.subr.bf16.mxu0 %v1725
      %2781 = vmatpush1.bf16.msra.mxu0 %v1724
      %2782 = vmatprep.subr.bf16.mxu0 %v1729
      %2783 = vmatpush1.bf16.msra.mxu0 %v1728
      %2784 = vmatprep.subr.bf16.mxu0 %v1733
      %2785 = vmatpush1.bf16.msra.mxu0 %v1732
      %2786 = vmatprep.subr.bf16.mxu0 %v1737
      %2787 = vmatpush1.bf16.msra.mxu0 %v1736
      %2788 = vmatprep.subr.bf16.mxu0 %v1741
      %2789 = vmatpush1.bf16.msra.mxu0 %v1740
      %2790 = vmatprep.subr.bf16.mxu0 %v1745
      %2791 = vmatpush1.bf16.msra.mxu0 %v1744
      %2792 = vmatprep.subr.bf16.mxu0 %v1749
      %2793 = vmatpush1.bf16.msra.mxu0 %v1748
      %2794 = vmatprep.subr.bf16.mxu0 %v1753
      %2795 = vmatpush1.bf16.msra.mxu0 %v1752
      %2796 = vmatprep.subr.bf16.mxu0 %v1757
      %2797 = vmatpush1.bf16.msra.mxu0 %v1756
      %2798 = vmatprep.subr.bf16.mxu0 %v1761
      %2799 = vmatpush1.bf16.msra.mxu0 %v1760
      %2800 = vmatprep.subr.bf16.mxu0 %v1765
      %2801 = vmatpush1.bf16.msra.mxu0 %v1764
      %2802 = vmatprep.subr.bf16.mxu0 %v1769
      %2803 = vmatpush1.bf16.msra.mxu0 %v1768
      %2804 = vmatprep.subr.bf16.mxu0 %v1773
      %2805 = vmatpush1.bf16.msra.mxu0 %v1772
      %2806 = vmatprep.subr.bf16.mxu0 %v1777
      %2807 = vmatpush1.bf16.msra.mxu0 %v1776
      %2808 = vmatprep.mubr.bf16.mxu0 %v695
      %2809 = vmatmul.mubr.bf16.gmra.mrb[0].mxu0 %v694
      %v2810 = vpop.f32.mrb[0].mxu0
      %v2811 = vadd.f32 %v2698, %v2810
      %v2812 = vpop.f32.mrb[0].mxu0
      %v2813 = vadd.f32 %v2700, %v2812
      %v2814 = vpop.f32.mrb[0].mxu0
      %v2815 = vadd.f32 %v2702, %v2814
      %v2816 = vpop.f32.mrb[0].mxu0
      %v2817 = vadd.f32 %v2704, %v2816
      %2818 = vmatprep.mubr.bf16.mxu0 %v703
      %2819 = vmatmul.mubr.bf16.gmra.mrb[0].mxu0 %v702
      %v2820 = vpop.f32.mrb[0].mxu0
      %v2821 = vadd.f32 %v2708, %v2820
      %v2822 = vpop.f32.mrb[0].mxu0
      %v2823 = vadd.f32 %v2710, %v2822
      %v2824 = vpop.f32.mrb[0].mxu0
      %v2825 = vadd.f32 %v2712, %v2824
      %v2826 = vpop.f32.mrb[0].mxu0
      %v2827 = vadd.f32 %v2714, %v2826
      %2828 = vmatprep.mubr.bf16.mxu0 %v711
      %2829 = vmatmul.mubr.bf16.gmra.mrb[0].mxu0 %v710
      %v2830 = vpop.f32.mrb[0].mxu0
      %v2831 = vadd.f32 %v2718, %v2830
      %v2832 = vpop.f32.mrb[0].mxu0
      %v2833 = vadd.f32 %v2720, %v2832
      %v2834 = vpop.f32.mrb[0].mxu0
      %v2835 = vadd.f32 %v2722, %v2834
      %v2836 = vpop.f32.mrb[0].mxu0
      %v2837 = vadd.f32 %v2724, %v2836
      %2838 = vmatprep.mubr.bf16.mxu0 %v719
      %2839 = vmatmul.mubr.bf16.gmra.mrb[0].mxu0 %v718
      %v2840 = vpop.f32.mrb[0].mxu0
      %v2841 = vadd.f32 %v2728, %v2840
      %v2842 = vpop.f32.mrb[0].mxu0
      %v2843 = vadd.f32 %v2730, %v2842
      %v2844 = vpop.f32.mrb[0].mxu0
      %v2845 = vadd.f32 %v2732, %v2844
      %v2846 = vpop.f32.mrb[0].mxu0
      %v2847 = vadd.f32 %v2734, %v2846
      %2848 = vmatprep.mubr.bf16.mxu0 %v727
      %2849 = vmatmul.mubr.bf16.gmra.mrb[0].mxu0 %v726
      %v2850 = vpop.f32.mrb[0].mxu0
      %v2851 = vadd.f32 %v2738, %v2850
      %v2852 = vpop.f32.mrb[0].mxu0
      %v2853 = vadd.f32 %v2740, %v2852
      %v2854 = vpop.f32.mrb[0].mxu0
      %v2855 = vadd.f32 %v2742, %v2854
      %v2856 = vpop.f32.mrb[0].mxu0
      %v2857 = vadd.f32 %v2744, %v2856
      %2858 = vmatprep.mubr.bf16.mxu0 %v735
      %2859 = vmatmul.mubr.bf16.gmra.mrb[0].mxu0 %v734
      %v2860 = vpop.f32.mrb[0].mxu0
      %v2861 = vadd.f32 %v2748, %v2860
      %v2862 = vpop.f32.mrb[0].mxu0
      %v2863 = vadd.f32 %v2750, %v2862
      %v2864 = vpop.f32.mrb[0].mxu0
      %v2865 = vadd.f32 %v2752, %v2864
      %v2866 = vpop.f32.mrb[0].mxu0
      %v2867 = vadd.f32 %v2754, %v2866
      %2868 = vmatprep.mubr.bf16.mxu0 %v743
      %2869 = vmatmul.mubr.bf16.gmra.mrb[0].mxu0 %v742
      %v2870 = vpop.f32.mrb[0].mxu0
      %v2871 = vadd.f32 %v2758, %v2870
      %v2872 = vpop.f32.mrb[0].mxu0
      %v2873 = vadd.f32 %v2760, %v2872
      %v2874 = vpop.f32.mrb[0].mxu0
      %v2875 = vadd.f32 %v2762, %v2874
      %v2876 = vpop.f32.mrb[0].mxu0
      %v2877 = vadd.f32 %v2764, %v2876
      %2878 = vmatprep.mubr.bf16.mxu0 %v751
      %2879 = vmatmul.mubr.bf16.gmra.mrb[0].mxu0 %v750
      %v2880 = vpop.f32.mrb[0].mxu0
      %v2881 = vadd.f32 %v2768, %v2880
      %v2882 = vpop.f32.mrb[0].mxu0
      %v2883 = vadd.f32 %v2770, %v2882
      %v2884 = vpop.f32.mrb[0].mxu0
      %v2885 = vadd.f32 %v2772, %v2884
      %v2886 = vpop.f32.mrb[0].mxu0
      %v2887 = vadd.f32 %v2774, %v2886
      %2888 = vdwg.mxu0
      %2889 = vmatprep.subr.bf16.mxu0 %v1781
      %2890 = vmatpush1.bf16.msra.mxu0 %v1780
      %2891 = vmatprep.subr.bf16.mxu0 %v1785
      %2892 = vmatpush1.bf16.msra.mxu0 %v1784
      %2893 = vmatprep.subr.bf16.mxu0 %v1789
      %2894 = vmatpush1.bf16.msra.mxu0 %v1788
      %2895 = vmatprep.subr.bf16.mxu0 %v1793
      %2896 = vmatpush1.bf16.msra.mxu0 %v1792
      %2897 = vmatprep.subr.bf16.mxu0 %v1797
      %2898 = vmatpush1.bf16.msra.mxu0 %v1796
      %2899 = vmatprep.subr.bf16.mxu0 %v1801
      %2900 = vmatpush1.bf16.msra.mxu0 %v1800
      %2901 = vmatprep.subr.bf16.mxu0 %v1805
      %2902 = vmatpush1.bf16.msra.mxu0 %v1804
      %2903 = vmatprep.subr.bf16.mxu0 %v1809
      %2904 = vmatpush1.bf16.msra.mxu0 %v1808
      %2905 = vmatprep.subr.bf16.mxu0 %v1813
      %2906 = vmatpush1.bf16.msra.mxu0 %v1812
      %2907 = vmatprep.subr.bf16.mxu0 %v1817
      %2908 = vmatpush1.bf16.msra.mxu0 %v1816
      %2909 = vmatprep.subr.bf16.mxu0 %v1821
      %2910 = vmatpush1.bf16.msra.mxu0 %v1820
      %2911 = vmatprep.subr.bf16.mxu0 %v1825
      %2912 = vmatpush1.bf16.msra.mxu0 %v1824
      %2913 = vmatprep.subr.bf16.mxu0 %v1829
      %2914 = vmatpush1.bf16.msra.mxu0 %v1828
      %2915 = vmatprep.subr.bf16.mxu0 %v1833
      %2916 = vmatpush1.bf16.msra.mxu0 %v1832
      %2917 = vmatprep.subr.bf16.mxu0 %v1837
      %2918 = vmatpush1.bf16.msra.mxu0 %v1836
      %2919 = vmatprep.subr.bf16.mxu0 %v1841
      %2920 = vmatpush1.bf16.msra.mxu0 %v1840
      %2921 = vmatprep.mubr.bf16.mxu0 %v697
      %2922 = vmatmul.mubr.bf16.gmra.mrb[0].mxu0 %v696
      %v2923 = vpop.f32.mrb[0].mxu0
      %v2924 = vadd.f32 %v2811, %v2923
      %v2925 = vpop.f32.mrb[0].mxu0
      %v2926 = vadd.f32 %v2813, %v2925
      %v2927 = vpop.f32.mrb[0].mxu0
      %v2928 = vadd.f32 %v2815, %v2927
      %v2929 = vpop.f32.mrb[0].mxu0
      %v2930 = vadd.f32 %v2817, %v2929
      %2931 = vmatprep.mubr.bf16.mxu0 %v705
      %2932 = vmatmul.mubr.bf16.gmra.mrb[0].mxu0 %v704
      %v2933 = vpop.f32.mrb[0].mxu0
      %v2934 = vadd.f32 %v2821, %v2933
      %v2935 = vpop.f32.mrb[0].mxu0
      %v2936 = vadd.f32 %v2823, %v2935
      %v2937 = vpop.f32.mrb[0].mxu0
      %v2938 = vadd.f32 %v2825, %v2937
      %v2939 = vpop.f32.mrb[0].mxu0
      %v2940 = vadd.f32 %v2827, %v2939
      %2941 = vmatprep.mubr.bf16.mxu0 %v713
      %2942 = vmatmul.mubr.bf16.gmra.mrb[0].mxu0 %v712
      %v2943 = vpop.f32.mrb[0].mxu0
      %v2944 = vadd.f32 %v2831, %v2943
      %v2945 = vpop.f32.mrb[0].mxu0
      %v2946 = vadd.f32 %v2833, %v2945
      %v2947 = vpop.f32.mrb[0].mxu0
      %v2948 = vadd.f32 %v2835, %v2947
      %v2949 = vpop.f32.mrb[0].mxu0
      %v2950 = vadd.f32 %v2837, %v2949
      %2951 = vmatprep.mubr.bf16.mxu0 %v721
      %2952 = vmatmul.mubr.bf16.gmra.mrb[0].mxu0 %v720
      %v2953 = vpop.f32.mrb[0].mxu0
      %v2954 = vadd.f32 %v2841, %v2953
      %v2955 = vpop.f32.mrb[0].mxu0
      %v2956 = vadd.f32 %v2843, %v2955
      %v2957 = vpop.f32.mrb[0].mxu0
      %v2958 = vadd.f32 %v2845, %v2957
      %v2959 = vpop.f32.mrb[0].mxu0
      %v2960 = vadd.f32 %v2847, %v2959
      %2961 = vmatprep.mubr.bf16.mxu0 %v729
      %2962 = vmatmul.mubr.bf16.gmra.mrb[0].mxu0 %v728
      %v2963 = vpop.f32.mrb[0].mxu0
      %v2964 = vadd.f32 %v2851, %v2963
      %v2965 = vpop.f32.mrb[0].mxu0
      %v2966 = vadd.f32 %v2853, %v2965
      %v2967 = vpop.f32.mrb[0].mxu0
      %v2968 = vadd.f32 %v2855, %v2967
      %v2969 = vpop.f32.mrb[0].mxu0
      %v2970 = vadd.f32 %v2857, %v2969
      %2971 = vmatprep.mubr.bf16.mxu0 %v737
      %2972 = vmatmul.mubr.bf16.gmra.mrb[0].mxu0 %v736
      %v2973 = vpop.f32.mrb[0].mxu0
      %v2974 = vadd.f32 %v2861, %v2973
      %v2975 = vpop.f32.mrb[0].mxu0
      %v2976 = vadd.f32 %v2863, %v2975
      %v2977 = vpop.f32.mrb[0].mxu0
      %v2978 = vadd.f32 %v2865, %v2977
      %v2979 = vpop.f32.mrb[0].mxu0
      %v2980 = vadd.f32 %v2867, %v2979
      %2981 = vmatprep.mubr.bf16.mxu0 %v745
      %2982 = vmatmul.mubr.bf16.gmra.mrb[0].mxu0 %v744
      %v2983 = vpop.f32.mrb[0].mxu0
      %v2984 = vadd.f32 %v2871, %v2983
      %v2985 = vpop.f32.mrb[0].mxu0
      %v2986 = vadd.f32 %v2873, %v2985
      %v2987 = vpop.f32.mrb[0].mxu0
      %v2988 = vadd.f32 %v2875, %v2987
      %v2989 = vpop.f32.mrb[0].mxu0
      %v2990 = vadd.f32 %v2877, %v2989
      %2991 = vmatprep.mubr.bf16.mxu0 %v753
      %2992 = vmatmul.mubr.bf16.gmra.mrb[0].mxu0 %v752
      %v2993 = vpop.f32.mrb[0].mxu0
      %v2994 = vadd.f32 %v2881, %v2993
      %v2995 = vpop.f32.mrb[0].mxu0
      %v2996 = vadd.f32 %v2883, %v2995
      %v2997 = vpop.f32.mrb[0].mxu0
      %v2998 = vadd.f32 %v2885, %v2997
      %v2999 = vpop.f32.mrb[0].mxu0
      %v3000 = vadd.f32 %v2887, %v2999
      %3001 = vdwg.mxu0
      %v3002 = vmax.f32 %v2472, 0.0
      %v3003 = vmax.f32 %v2474, 0.0
      %v3004 = vmax.f32 %v2924, 0.0
      %v3005 = vmax.f32 %v2926, 0.0
      %v3006 = vmax.f32 %v2476, 0.0
      %v3007 = vmax.f32 %v2478, 0.0
      %v3008 = vmax.f32 %v2928, 0.0
      %v3009 = vmax.f32 %v2930, 0.0
      %v3010 = vmax.f32 %v2482, 0.0
      %v3011 = vmax.f32 %v2484, 0.0
      %v3012 = vmax.f32 %v2934, 0.0
      %v3013 = vmax.f32 %v2936, 0.0
      %v3014 = vmax.f32 %v2486, 0.0
      %v3015 = vmax.f32 %v2488, 0.0
      %v3016 = vmax.f32 %v2938, 0.0
      %v3017 = vmax.f32 %v2940, 0.0
      %v3018 = vmax.f32 %v2492, 0.0
      %v3019 = vmax.f32 %v2494, 0.0
      %v3020 = vmax.f32 %v2944, 0.0
      %v3021 = vmax.f32 %v2946, 0.0
      %v3022 = vmax.f32 %v2496, 0.0
      %v3023 = vmax.f32 %v2498, 0.0
      %v3024 = vmax.f32 %v2948, 0.0
      %v3025 = vmax.f32 %v2950, 0.0
      %v3026 = vmax.f32 %v2502, 0.0
      %v3027 = vmax.f32 %v2504, 0.0
      %v3028 = vmax.f32 %v2954, 0.0
      %v3029 = vmax.f32 %v2956, 0.0
      %v3030 = vmax.f32 %v2506, 0.0
      %v3031 = vmax.f32 %v2508, 0.0
      %v3032 = vmax.f32 %v2958, 0.0
      %v3033 = vmax.f32 %v2960, 0.0
      %v3034 = vmax.f32 %v2512, 0.0
      %v3035 = vmax.f32 %v2514, 0.0
      %v3036 = vmax.f32 %v2964, 0.0
      %v3037 = vmax.f32 %v2966, 0.0
      %v3038 = vmax.f32 %v2516, 0.0
      %v3039 = vmax.f32 %v2518, 0.0
      %v3040 = vmax.f32 %v2968, 0.0
      %v3041 = vmax.f32 %v2970, 0.0
      %v3042 = vmax.f32 %v2522, 0.0
      %v3043 = vmax.f32 %v2524, 0.0
      %v3044 = vmax.f32 %v2974, 0.0
      %v3045 = vmax.f32 %v2976, 0.0
      %v3046 = vmax.f32 %v2526, 0.0
      %v3047 = vmax.f32 %v2528, 0.0
      %v3048 = vmax.f32 %v2978, 0.0
      %v3049 = vmax.f32 %v2980, 0.0
      %v3050 = vmax.f32 %v2532, 0.0
      %v3051 = vmax.f32 %v2534, 0.0
      %v3052 = vmax.f32 %v2984, 0.0
      %v3053 = vmax.f32 %v2986, 0.0
      %v3054 = vmax.f32 %v2536, 0.0
      %v3055 = vmax.f32 %v2538, 0.0
      %v3056 = vmax.f32 %v2988, 0.0
      %v3057 = vmax.f32 %v2990, 0.0
      %v3058 = vmax.f32 %v2542, 0.0
      %v3059 = vmax.f32 %v2544, 0.0
      %v3060 = vmax.f32 %v2994, 0.0
      %v3061 = vmax.f32 %v2996, 0.0
      %v3062 = vmax.f32 %v2546, 0.0
      %v3063 = vmax.f32 %v2548, 0.0
      %v3064 = vmax.f32 %v2998, 0.0
      %v3065 = vmax.f32 %v3000, 0.0
      %v3066 = vpack.c.bf16 %v3006, %v3002
      %v3067 = vpack.c.bf16 %v3007, %v3003
      %v3068 = vpack.c.bf16 %v3008, %v3004
      %v3069 = vpack.c.bf16 %v3009, %v3005
      %v3070 = vpack.c.bf16 %v3014, %v3010
      %v3071 = vpack.c.bf16 %v3015, %v3011
      %v3072 = vpack.c.bf16 %v3016, %v3012
      %v3073 = vpack.c.bf16 %v3017, %v3013
      %v3074 = vpack.c.bf16 %v3022, %v3018
      %v3075 = vpack.c.bf16 %v3023, %v3019
      %v3076 = vpack.c.bf16 %v3024, %v3020
      %v3077 = vpack.c.bf16 %v3025, %v3021
      %v3078 = vpack.c.bf16 %v3030, %v3026
      %v3079 = vpack.c.bf16 %v3031, %v3027
      %v3080 = vpack.c.bf16 %v3032, %v3028
      %v3081 = vpack.c.bf16 %v3033, %v3029
      %v3082 = vpack.c.bf16 %v3038, %v3034
      %v3083 = vpack.c.bf16 %v3039, %v3035
      %v3084 = vpack.c.bf16 %v3040, %v3036
      %v3085 = vpack.c.bf16 %v3041, %v3037
      %v3086 = vpack.c.bf16 %v3046, %v3042
      %v3087 = vpack.c.bf16 %v3047, %v3043
      %v3088 = vpack.c.bf16 %v3048, %v3044
      %v3089 = vpack.c.bf16 %v3049, %v3045
      %v3090 = vpack.c.bf16 %v3054, %v3050
      %v3091 = vpack.c.bf16 %v3055, %v3051
      %v3092 = vpack.c.bf16 %v3056, %v3052
      %v3093 = vpack.c.bf16 %v3057, %v3053
      %v3094 = vpack.c.bf16 %v3062, %v3058
      %v3095 = vpack.c.bf16 %v3063, %v3059
      %v3096 = vpack.c.bf16 %v3064, %v3060
      %v3097 = vpack.c.bf16 %v3065, %v3061
      %v3098 = vld [vmem:[%s2] sm:$0xf]
      %v3099 = vld [vmem:[%s2 + $0x4] sm:$0xf]
      %v3100 = vld [vmem:[%s2 + $0x8] sm:$0xf]
      %v3101 = vld [vmem:[%s2 + $0xc] sm:$0xf]
      %v3102 = vld [vmem:[%s2 + $0x10] sm:$0xf]
      %v3103 = vld [vmem:[%s2 + $0x14] sm:$0xf]
      %v3104 = vld [vmem:[%s2 + $0x18] sm:$0xf]
      %v3105 = vld [vmem:[%s2 + $0x1c] sm:$0xf]
      %v3106 = vld [vmem:[%s2 + $0x20] sm:$0xf]
      %v3107 = vld [vmem:[%s2 + $0x24] sm:$0xf]
      %v3108 = vld [vmem:[%s2 + $0x28] sm:$0xf]
      %v3109 = vld [vmem:[%s2 + $0x2c] sm:$0xf]
      %v3110 = vld [vmem:[%s2 + $0x30] sm:$0xf]
      %v3111 = vld [vmem:[%s2 + $0x34] sm:$0xf]
      %v3112 = vld [vmem:[%s2 + $0x38] sm:$0xf]
      %v3113 = vld [vmem:[%s2 + $0x3c] sm:$0xf]
      %v3114 = vld [vmem:[%s2 + $0x40] sm:$0xf]
      %v3115 = vld [vmem:[%s2 + $0x44] sm:$0xf]
      %v3116 = vld [vmem:[%s2 + $0x48] sm:$0xf]
      %v3117 = vld [vmem:[%s2 + $0x4c] sm:$0xf]
      %v3118 = vld [vmem:[%s2 + $0x50] sm:$0xf]
      %v3119 = vld [vmem:[%s2 + $0x54] sm:$0xf]
      %v3120 = vld [vmem:[%s2 + $0x58] sm:$0xf]
      %v3121 = vld [vmem:[%s2 + $0x5c] sm:$0xf]
      %v3122 = vld [vmem:[%s2 + $0x60] sm:$0xf]
      %v3123 = vld [vmem:[%s2 + $0x64] sm:$0xf]
      %v3124 = vld [vmem:[%s2 + $0x68] sm:$0xf]
      %v3125 = vld [vmem:[%s2 + $0x6c] sm:$0xf]
      %v3126 = vld [vmem:[%s2 + $0x70] sm:$0xf]
      %v3127 = vld [vmem:[%s2 + $0x74] sm:$0xf]
      %v3128 = vld [vmem:[%s2 + $0x78] sm:$0xf]
      %v3129 = vld [vmem:[%s2 + $0x7c] sm:$0xf]
      %v3130 = vld [vmem:[%s2 + $0x80] sm:$0xf]
      %v3131 = vld [vmem:[%s2 + $0x84] sm:$0xf]
      %v3132 = vld [vmem:[%s2 + $0x88] sm:$0xf]
      %v3133 = vld [vmem:[%s2 + $0x8c] sm:$0xf]
      %v3134 = vld [vmem:[%s2 + $0x90] sm:$0xf]
      %v3135 = vld [vmem:[%s2 + $0x94] sm:$0xf]
      %v3136 = vld [vmem:[%s2 + $0x98] sm:$0xf]
      %v3137 = vld [vmem:[%s2 + $0x9c] sm:$0xf]
      %v3138 = vld [vmem:[%s2 + $0xa0] sm:$0xf]
      %v3139 = vld [vmem:[%s2 + $0xa4] sm:$0xf]
      %v3140 = vld [vmem:[%s2 + $0xa8] sm:$0xf]
      %v3141 = vld [vmem:[%s2 + $0xac] sm:$0xf]
      %v3142 = vld [vmem:[%s2 + $0xb0] sm:$0xf]
      %v3143 = vld [vmem:[%s2 + $0xb4] sm:$0xf]
      %v3144 = vld [vmem:[%s2 + $0xb8] sm:$0xf]
      %v3145 = vld [vmem:[%s2 + $0xbc] sm:$0xf]
      %v3146 = vld [vmem:[%s2 + $0xc0] sm:$0xf]
      %v3147 = vld [vmem:[%s2 + $0xc4] sm:$0xf]
      %v3148 = vld [vmem:[%s2 + $0xc8] sm:$0xf]
      %v3149 = vld [vmem:[%s2 + $0xcc] sm:$0xf]
      %v3150 = vld [vmem:[%s2 + $0xd0] sm:$0xf]
      %v3151 = vld [vmem:[%s2 + $0xd4] sm:$0xf]
      %v3152 = vld [vmem:[%s2 + $0xd8] sm:$0xf]
      %v3153 = vld [vmem:[%s2 + $0xdc] sm:$0xf]
      %v3154 = vld [vmem:[%s2 + $0xe0] sm:$0xf]
      %v3155 = vld [vmem:[%s2 + $0xe4] sm:$0xf]
      %v3156 = vld [vmem:[%s2 + $0xe8] sm:$0xf]
      %v3157 = vld [vmem:[%s2 + $0xec] sm:$0xf]
      %v3158 = vld [vmem:[%s2 + $0xf0] sm:$0xf]
      %v3159 = vld [vmem:[%s2 + $0xf4] sm:$0xf]
      %v3160 = vld [vmem:[%s2 + $0xf8] sm:$0xf]
      %v3161 = vld [vmem:[%s2 + $0xfc] sm:$0xf]
      %v3226 = vunpack.c.l.b16 %v3098
      %v3227 = vunpack.c.l.b16 %v3099
      %v3228 = vunpack.c.l.b16 %v3100
      %v3229 = vunpack.c.l.b16 %v3101
      %v3230 = vunpack.c.l.b16 %v3102
      %v3231 = vunpack.c.l.b16 %v3103
      %v3232 = vunpack.c.l.b16 %v3104
      %v3233 = vunpack.c.l.b16 %v3105
      %v3234 = vunpack.c.l.b16 %v3106
      %v3235 = vunpack.c.l.b16 %v3107
      %v3236 = vunpack.c.l.b16 %v3108
      %v3237 = vunpack.c.l.b16 %v3109
      %v3238 = vunpack.c.l.b16 %v3110
      %v3239 = vunpack.c.l.b16 %v3111
      %v3240 = vunpack.c.l.b16 %v3112
      %v3241 = vunpack.c.l.b16 %v3113
      %v3242 = vunpack.c.l.b16 %v3114
      %v3243 = vunpack.c.l.b16 %v3115
      %v3244 = vunpack.c.l.b16 %v3116
      %v3245 = vunpack.c.l.b16 %v3117
      %v3246 = vunpack.c.l.b16 %v3118
      %v3247 = vunpack.c.l.b16 %v3119
      %v3248 = vunpack.c.l.b16 %v3120
      %v3249 = vunpack.c.l.b16 %v3121
      %v3250 = vunpack.c.l.b16 %v3122
      %v3251 = vunpack.c.l.b16 %v3123
      %v3252 = vunpack.c.l.b16 %v3124
      %v3253 = vunpack.c.l.b16 %v3125
      %v3254 = vunpack.c.l.b16 %v3126
      %v3255 = vunpack.c.l.b16 %v3127
      %v3256 = vunpack.c.l.b16 %v3128
      %v3257 = vunpack.c.l.b16 %v3129
      %v3258 = vunpack.c.l.b16 %v3130
      %v3259 = vunpack.c.l.b16 %v3131
      %v3260 = vunpack.c.l.b16 %v3132
      %v3261 = vunpack.c.l.b16 %v3133
      %v3262 = vunpack.c.l.b16 %v3134
      %v3263 = vunpack.c.l.b16 %v3135
      %v3264 = vunpack.c.l.b16 %v3136
      %v3265 = vunpack.c.l.b16 %v3137
      %v3266 = vunpack.c.l.b16 %v3138
      %v3267 = vunpack.c.l.b16 %v3139
      %v3268 = vunpack.c.l.b16 %v3140
      %v3269 = vunpack.c.l.b16 %v3141
      %v3270 = vunpack.c.l.b16 %v3142
      %v3271 = vunpack.c.l.b16 %v3143
      %v3272 = vunpack.c.l.b16 %v3144
      %v3273 = vunpack.c.l.b16 %v3145
      %v3274 = vunpack.c.l.b16 %v3146
      %v3275 = vunpack.c.l.b16 %v3147
      %v3276 = vunpack.c.l.b16 %v3148
      %v3277 = vunpack.c.l.b16 %v3149
      %v3278 = vunpack.c.l.b16 %v3150
      %v3279 = vunpack.c.l.b16 %v3151
      %v3280 = vunpack.c.l.b16 %v3152
      %v3281 = vunpack.c.l.b16 %v3153
      %v3282 = vunpack.c.l.b16 %v3154
      %v3283 = vunpack.c.l.b16 %v3155
      %v3284 = vunpack.c.l.b16 %v3156
      %v3285 = vunpack.c.l.b16 %v3157
      %v3286 = vunpack.c.l.b16 %v3158
      %v3287 = vunpack.c.l.b16 %v3159
      %v3288 = vunpack.c.l.b16 %v3160
      %v3289 = vunpack.c.l.b16 %v3161
      %v3290 = vpack.c.b16 %v3227, %v3226
      %v3291 = vpack.c.b16 %v3229, %v3228
      %v3292 = vpack.c.b16 %v3231, %v3230
      %v3293 = vpack.c.b16 %v3233, %v3232
      %v3294 = vpack.c.b16 %v3235, %v3234
      %v3295 = vpack.c.b16 %v3237, %v3236
      %v3296 = vpack.c.b16 %v3239, %v3238
      %v3297 = vpack.c.b16 %v3241, %v3240
      %v3298 = vpack.c.b16 %v3243, %v3242
      %v3299 = vpack.c.b16 %v3245, %v3244
      %v3300 = vpack.c.b16 %v3247, %v3246
      %v3301 = vpack.c.b16 %v3249, %v3248
      %v3302 = vpack.c.b16 %v3251, %v3250
      %v3303 = vpack.c.b16 %v3253, %v3252
      %v3304 = vpack.c.b16 %v3255, %v3254
      %v3305 = vpack.c.b16 %v3257, %v3256
      %v3306 = vpack.c.b16 %v3259, %v3258
      %v3307 = vpack.c.b16 %v3261, %v3260
      %v3308 = vpack.c.b16 %v3263, %v3262
      %v3309 = vpack.c.b16 %v3265, %v3264
      %v3310 = vpack.c.b16 %v3267, %v3266
      %v3311 = vpack.c.b16 %v3269, %v3268
      %v3312 = vpack.c.b16 %v3271, %v3270
      %v3313 = vpack.c.b16 %v3273, %v3272
      %v3314 = vpack.c.b16 %v3275, %v3274
      %v3315 = vpack.c.b16 %v3277, %v3276
      %v3316 = vpack.c.b16 %v3279, %v3278
      %v3317 = vpack.c.b16 %v3281, %v3280
      %v3318 = vpack.c.b16 %v3283, %v3282
      %v3319 = vpack.c.b16 %v3285, %v3284
      %v3320 = vpack.c.b16 %v3287, %v3286
      %v3321 = vpack.c.b16 %v3289, %v3288
      %3354 = vmatprep.subr.bf16.mxu0 0
      %3355 = vmatpush1.bf16.msra.mxu0 %v3290
      %3356 = vmatprep.subr.bf16.mxu0 0
      %3357 = vmatpush1.bf16.msra.mxu0 %v3291
      %3358 = vmatprep.subr.bf16.mxu0 0
      %3359 = vmatpush1.bf16.msra.mxu0 %v3292
      %3360 = vmatprep.subr.bf16.mxu0 0
      %3361 = vmatpush1.bf16.msra.mxu0 %v3293
      %3362 = vmatprep.subr.bf16.mxu0 0
      %3363 = vmatpush1.bf16.msra.mxu0 %v3294
      %3364 = vmatprep.subr.bf16.mxu0 0
      %3365 = vmatpush1.bf16.msra.mxu0 %v3295
      %3366 = vmatprep.subr.bf16.mxu0 0
      %3367 = vmatpush1.bf16.msra.mxu0 %v3296
      %3368 = vmatprep.subr.bf16.mxu0 0
      %3369 = vmatpush1.bf16.msra.mxu0 %v3297
      %3370 = vmatprep.subr.bf16.mxu0 0
      %3371 = vmatpush1.bf16.msra.mxu0 %v3298
      %3372 = vmatprep.subr.bf16.mxu0 0
      %3373 = vmatpush1.bf16.msra.mxu0 %v3299
      %3374 = vmatprep.subr.bf16.mxu0 0
      %3375 = vmatpush1.bf16.msra.mxu0 %v3300
      %3376 = vmatprep.subr.bf16.mxu0 0
      %3377 = vmatpush1.bf16.msra.mxu0 %v3301
      %3378 = vmatprep.subr.bf16.mxu0 0
      %3379 = vmatpush1.bf16.msra.mxu0 %v3302
      %3380 = vmatprep.subr.bf16.mxu0 0
      %3381 = vmatpush1.bf16.msra.mxu0 %v3303
      %3382 = vmatprep.subr.bf16.mxu0 0
      %3383 = vmatpush1.bf16.msra.mxu0 %v3304
      %3384 = vmatprep.subr.bf16.mxu0 0
      %3385 = vmatpush1.bf16.msra.mxu0 %v3305
      %3386 = vmatprep.mubr.bf16.mxu0 %v3067
      %3387 = vmatmul.mubr.bf16.gmra.mrb[0].mxu0 %v3066
      %v3388 = vpop.f32.mrb[0].mxu0
      %v3389 = vadd.f32 0.0, %v3388
      %v3390 = vpop.f32.mrb[0].mxu0
      %v3391 = vpop.f32.mrb[0].mxu0
      %v3392 = vadd.f32 0.0, %v3391
      %v3393 = vpop.f32.mrb[0].mxu0
      %3394 = vmatprep.mubr.bf16.mxu0 %v3071
      %3395 = vmatmul.mubr.bf16.gmra.mrb[0].mxu0 %v3070
      %v3396 = vpop.f32.mrb[0].mxu0
      %v3397 = vadd.f32 0.0, %v3396
      %v3398 = vpop.f32.mrb[0].mxu0
      %v3399 = vpop.f32.mrb[0].mxu0
      %v3400 = vadd.f32 0.0, %v3399
      %v3401 = vpop.f32.mrb[0].mxu0
      %3402 = vmatprep.mubr.bf16.mxu0 %v3075
      %3403 = vmatmul.mubr.bf16.gmra.mrb[0].mxu0 %v3074
      %v3404 = vpop.f32.mrb[0].mxu0
      %v3405 = vadd.f32 0.0, %v3404
      %v3406 = vpop.f32.mrb[0].mxu0
      %v3407 = vpop.f32.mrb[0].mxu0
      %v3408 = vadd.f32 0.0, %v3407
      %v3409 = vpop.f32.mrb[0].mxu0
      %3410 = vmatprep.mubr.bf16.mxu0 %v3079
      %3411 = vmatmul.mubr.bf16.gmra.mrb[0].mxu0 %v3078
      %v3412 = vpop.f32.mrb[0].mxu0
      %v3413 = vadd.f32 0.0, %v3412
      %v3414 = vpop.f32.mrb[0].mxu0
      %v3415 = vpop.f32.mrb[0].mxu0
      %v3416 = vadd.f32 0.0, %v3415
      %v3417 = vpop.f32.mrb[0].mxu0
      %3418 = vmatprep.mubr.bf16.mxu0 %v3083
      %3419 = vmatmul.mubr.bf16.gmra.mrb[0].mxu0 %v3082
      %v3420 = vpop.f32.mrb[0].mxu0
      %v3421 = vadd.f32 0.0, %v3420
      %v3422 = vpop.f32.mrb[0].mxu0
      %v3423 = vpop.f32.mrb[0].mxu0
      %v3424 = vadd.f32 0.0, %v3423
      %v3425 = vpop.f32.mrb[0].mxu0
      %3426 = vmatprep.mubr.bf16.mxu0 %v3087
      %3427 = vmatmul.mubr.bf16.gmra.mrb[0].mxu0 %v3086
      %v3428 = vpop.f32.mrb[0].mxu0
      %v3429 = vadd.f32 0.0, %v3428
      %v3430 = vpop.f32.mrb[0].mxu0
      %v3431 = vpop.f32.mrb[0].mxu0
      %v3432 = vadd.f32 0.0, %v3431
      %v3433 = vpop.f32.mrb[0].mxu0
      %3434 = vmatprep.mubr.bf16.mxu0 %v3091
      %3435 = vmatmul.mubr.bf16.gmra.mrb[0].mxu0 %v3090
      %v3436 = vpop.f32.mrb[0].mxu0
      %v3437 = vadd.f32 0.0, %v3436
      %v3438 = vpop.f32.mrb[0].mxu0
      %v3439 = vpop.f32.mrb[0].mxu0
      %v3440 = vadd.f32 0.0, %v3439
      %v3441 = vpop.f32.mrb[0].mxu0
      %3442 = vmatprep.mubr.bf16.mxu0 %v3095
      %3443 = vmatmul.mubr.bf16.gmra.mrb[0].mxu0 %v3094
      %v3444 = vpop.f32.mrb[0].mxu0
      %v3445 = vadd.f32 0.0, %v3444
      %v3446 = vpop.f32.mrb[0].mxu0
      %v3447 = vpop.f32.mrb[0].mxu0
      %v3448 = vadd.f32 0.0, %v3447
      %v3449 = vpop.f32.mrb[0].mxu0
      %3450 = vdwg.mxu0
      %3451 = vmatprep.subr.bf16.mxu0 0
      %3452 = vmatpush1.bf16.msra.mxu0 %v3306
      %3453 = vmatprep.subr.bf16.mxu0 0
      %3454 = vmatpush1.bf16.msra.mxu0 %v3307
      %3455 = vmatprep.subr.bf16.mxu0 0
      %3456 = vmatpush1.bf16.msra.mxu0 %v3308
      %3457 = vmatprep.subr.bf16.mxu0 0
      %3458 = vmatpush1.bf16.msra.mxu0 %v3309
      %3459 = vmatprep.subr.bf16.mxu0 0
      %3460 = vmatpush1.bf16.msra.mxu0 %v3310
      %3461 = vmatprep.subr.bf16.mxu0 0
      %3462 = vmatpush1.bf16.msra.mxu0 %v3311
      %3463 = vmatprep.subr.bf16.mxu0 0
      %3464 = vmatpush1.bf16.msra.mxu0 %v3312
      %3465 = vmatprep.subr.bf16.mxu0 0
      %3466 = vmatpush1.bf16.msra.mxu0 %v3313
      %3467 = vmatprep.subr.bf16.mxu0 0
      %3468 = vmatpush1.bf16.msra.mxu0 %v3314
      %3469 = vmatprep.subr.bf16.mxu0 0
      %3470 = vmatpush1.bf16.msra.mxu0 %v3315
      %3471 = vmatprep.subr.bf16.mxu0 0
      %3472 = vmatpush1.bf16.msra.mxu0 %v3316
      %3473 = vmatprep.subr.bf16.mxu0 0
      %3474 = vmatpush1.bf16.msra.mxu0 %v3317
      %3475 = vmatprep.subr.bf16.mxu0 0
      %3476 = vmatpush1.bf16.msra.mxu0 %v3318
      %3477 = vmatprep.subr.bf16.mxu0 0
      %3478 = vmatpush1.bf16.msra.mxu0 %v3319
      %3479 = vmatprep.subr.bf16.mxu0 0
      %3480 = vmatpush1.bf16.msra.mxu0 %v3320
      %3481 = vmatprep.subr.bf16.mxu0 0
      %3482 = vmatpush1.bf16.msra.mxu0 %v3321
      %3483 = vmatprep.mubr.bf16.mxu0 %v3069
      %3484 = vmatmul.mubr.bf16.gmra.mrb[0].mxu0 %v3068
      %v3485 = vpop.f32.mrb[0].mxu0
      %v3486 = vadd.f32 %v3389, %v3485
      %v3487 = vpop.f32.mrb[0].mxu0
      %v3488 = vpop.f32.mrb[0].mxu0
      %v3489 = vadd.f32 %v3392, %v3488
      %v3490 = vpop.f32.mrb[0].mxu0
      %3491 = vmatprep.mubr.bf16.mxu0 %v3073
      %3492 = vmatmul.mubr.bf16.gmra.mrb[0].mxu0 %v3072
      %v3493 = vpop.f32.mrb[0].mxu0
      %v3494 = vadd.f32 %v3397, %v3493
      %v3495 = vpop.f32.mrb[0].mxu0
      %v3496 = vpop.f32.mrb[0].mxu0
      %v3497 = vadd.f32 %v3400, %v3496
      %v3498 = vpop.f32.mrb[0].mxu0
      %3499 = vmatprep.mubr.bf16.mxu0 %v3077
      %3500 = vmatmul.mubr.bf16.gmra.mrb[0].mxu0 %v3076
      %v3501 = vpop.f32.mrb[0].mxu0
      %v3502 = vadd.f32 %v3405, %v3501
      %v3503 = vpop.f32.mrb[0].mxu0
      %v3504 = vpop.f32.mrb[0].mxu0
      %v3505 = vadd.f32 %v3408, %v3504
      %v3506 = vpop.f32.mrb[0].mxu0
      %3507 = vmatprep.mubr.bf16.mxu0 %v3081
      %3508 = vmatmul.mubr.bf16.gmra.mrb[0].mxu0 %v3080
      %v3509 = vpop.f32.mrb[0].mxu0
      %v3510 = vadd.f32 %v3413, %v3509
      %v3511 = vpop.f32.mrb[0].mxu0
      %v3512 = vpop.f32.mrb[0].mxu0
      %v3513 = vadd.f32 %v3416, %v3512
      %v3514 = vpop.f32.mrb[0].mxu0
      %3515 = vmatprep.mubr.bf16.mxu0 %v3085
      %3516 = vmatmul.mubr.bf16.gmra.mrb[0].mxu0 %v3084
      %v3517 = vpop.f32.mrb[0].mxu0
      %v3518 = vadd.f32 %v3421, %v3517
      %v3519 = vpop.f32.mrb[0].mxu0
      %v3520 = vpop.f32.mrb[0].mxu0
      %v3521 = vadd.f32 %v3424, %v3520
      %v3522 = vpop.f32.mrb[0].mxu0
      %3523 = vmatprep.mubr.bf16.mxu0 %v3089
      %3524 = vmatmul.mubr.bf16.gmra.mrb[0].mxu0 %v3088
      %v3525 = vpop.f32.mrb[0].mxu0
      %v3526 = vadd.f32 %v3429, %v3525
      %v3527 = vpop.f32.mrb[0].mxu0
      %v3528 = vpop.f32.mrb[0].mxu0
      %v3529 = vadd.f32 %v3432, %v3528
      %v3530 = vpop.f32.mrb[0].mxu0
      %3531 = vmatprep.mubr.bf16.mxu0 %v3093
      %3532 = vmatmul.mubr.bf16.gmra.mrb[0].mxu0 %v3092
      %v3533 = vpop.f32.mrb[0].mxu0
      %v3534 = vadd.f32 %v3437, %v3533
      %v3535 = vpop.f32.mrb[0].mxu0
      %v3536 = vpop.f32.mrb[0].mxu0
      %v3537 = vadd.f32 %v3440, %v3536
      %v3538 = vpop.f32.mrb[0].mxu0
      %3539 = vmatprep.mubr.bf16.mxu0 %v3097
      %3540 = vmatmul.mubr.bf16.gmra.mrb[0].mxu0 %v3096
      %v3541 = vpop.f32.mrb[0].mxu0
      %v3542 = vadd.f32 %v3445, %v3541
      %v3543 = vpop.f32.mrb[0].mxu0
      %v3544 = vpop.f32.mrb[0].mxu0
      %v3545 = vadd.f32 %v3448, %v3544
      %v3546 = vpop.f32.mrb[0].mxu0
      %3547 = vdwg.mxu0
      %v3548 = vxor.u32 %v3486, 2147483648
      %v3549 = vxor.u32 %v3489, 2147483648
      %v3550 = vxor.u32 %v3494, 2147483648
      %v3551 = vxor.u32 %v3497, 2147483648
      %v3552 = vxor.u32 %v3502, 2147483648
      %v3553 = vxor.u32 %v3505, 2147483648
      %v3554 = vxor.u32 %v3510, 2147483648
      %v3555 = vxor.u32 %v3513, 2147483648
      %v3556 = vxor.u32 %v3518, 2147483648
      %v3557 = vxor.u32 %v3521, 2147483648
      %v3558 = vxor.u32 %v3526, 2147483648
      %v3559 = vxor.u32 %v3529, 2147483648
      %v3560 = vxor.u32 %v3534, 2147483648
      %v3561 = vxor.u32 %v3537, 2147483648
      %v3562 = vxor.u32 %v3542, 2147483648
      %v3563 = vxor.u32 %v3545, 2147483648
      %v3564 = vmul.f32 %v3548, 1.442695
      %v3565 = vpow.pop %v3564
      %v3566 = vmul.f32 %v3549, 1.442695
      %v3567 = vpow.pop %v3566
      %v3568 = vmul.f32 %v3550, 1.442695
      %v3569 = vpow.pop %v3568
      %v3570 = vmul.f32 %v3551, 1.442695
      %v3571 = vpow.pop %v3570
      %v3572 = vmul.f32 %v3552, 1.442695
      %v3573 = vpow.pop %v3572
      %v3574 = vmul.f32 %v3553, 1.442695
      %v3575 = vpow.pop %v3574
      %v3576 = vmul.f32 %v3554, 1.442695
      %v3577 = vpow.pop %v3576
      %v3578 = vmul.f32 %v3555, 1.442695
      %v3579 = vpow.pop %v3578
      %v3580 = vmul.f32 %v3556, 1.442695
      %v3581 = vpow.pop %v3580
      %v3582 = vmul.f32 %v3557, 1.442695
      %v3583 = vpow.pop %v3582
      %v3584 = vmul.f32 %v3558, 1.442695
      %v3585 = vpow.pop %v3584
      %v3586 = vmul.f32 %v3559, 1.442695
      %v3587 = vpow.pop %v3586
      %v3588 = vmul.f32 %v3560, 1.442695
      %v3589 = vpow.pop %v3588
      %v3590 = vmul.f32 %v3561, 1.442695
      %v3591 = vpow.pop %v3590
      %v3592 = vmul.f32 %v3562, 1.442695
      %v3593 = vpow.pop %v3592
      %v3594 = vmul.f32 %v3563, 1.442695
      %v3595 = vpow.pop %v3594
      %v3596 = vadd.f32 %v3565, 1.0
      %v3597 = vadd.f32 %v3567, 1.0
      %v3598 = vadd.f32 %v3569, 1.0
      %v3599 = vadd.f32 %v3571, 1.0
      %v3600 = vadd.f32 %v3573, 1.0
      %v3601 = vadd.f32 %v3575, 1.0
      %v3602 = vadd.f32 %v3577, 1.0
      %v3603 = vadd.f32 %v3579, 1.0
      %v3604 = vadd.f32 %v3581, 1.0
      %v3605 = vadd.f32 %v3583, 1.0
      %v3606 = vadd.f32 %v3585, 1.0
      %v3607 = vadd.f32 %v3587, 1.0
      %v3608 = vadd.f32 %v3589, 1.0
      %v3609 = vadd.f32 %v3591, 1.0
      %v3610 = vadd.f32 %v3593, 1.0
      %v3611 = vadd.f32 %v3595, 1.0
      %v3612 = vrcp.pop %v3596
      %v3613 = vmul.f32 1.0, %v3612
      %v3614 = vrcp.pop %v3597
      %v3615 = vmul.f32 1.0, %v3614
      %v3616 = vrcp.pop %v3598
      %v3617 = vmul.f32 1.0, %v3616
      %v3618 = vrcp.pop %v3599
      %v3619 = vmul.f32 1.0, %v3618
      %v3620 = vrcp.pop %v3600
      %v3621 = vmul.f32 1.0, %v3620
      %v3622 = vrcp.pop %v3601
      %v3623 = vmul.f32 1.0, %v3622
      %v3624 = vrcp.pop %v3602
      %v3625 = vmul.f32 1.0, %v3624
      %v3626 = vrcp.pop %v3603
      %v3627 = vmul.f32 1.0, %v3626
      %v3628 = vrcp.pop %v3604
      %v3629 = vmul.f32 1.0, %v3628
      %v3630 = vrcp.pop %v3605
      %v3631 = vmul.f32 1.0, %v3630
      %v3632 = vrcp.pop %v3606
      %v3633 = vmul.f32 1.0, %v3632
      %v3634 = vrcp.pop %v3607
      %v3635 = vmul.f32 1.0, %v3634
      %v3636 = vrcp.pop %v3608
      %v3637 = vmul.f32 1.0, %v3636
      %v3638 = vrcp.pop %v3609
      %v3639 = vmul.f32 1.0, %v3638
      %v3640 = vrcp.pop %v3610
      %v3641 = vmul.f32 1.0, %v3640
      %v3642 = vrcp.pop %v3611
      %v3643 = vmul.f32 1.0, %v3642
      %3644 = vst [vmem:[%s175] sm:$0xff] %v3613
      %3645 = vst [vmem:[%s175 + $0x8] sm:$0xff] %v3615
      %3646 = vst [vmem:[%s175 + $0x10] sm:$0xff] %v3617
      %3647 = vst [vmem:[%s175 + $0x18] sm:$0xff] %v3619
      %3648 = vst [vmem:[%s175 + $0x20] sm:$0xff] %v3621
      %3649 = vst [vmem:[%s175 + $0x28] sm:$0xff] %v3623
      %3650 = vst [vmem:[%s175 + $0x30] sm:$0xff] %v3625
      %3651 = vst [vmem:[%s175 + $0x38] sm:$0xff] %v3627
      %3652 = vst [vmem:[%s175 + $0x40] sm:$0xff] %v3629
      %3653 = vst [vmem:[%s175 + $0x48] sm:$0xff] %v3631
      %3654 = vst [vmem:[%s175 + $0x50] sm:$0xff] %v3633
      %3655 = vst [vmem:[%s175 + $0x58] sm:$0xff] %v3635
      %3656 = vst [vmem:[%s175 + $0x60] sm:$0xff] %v3637
      %3657 = vst [vmem:[%s175 + $0x68] sm:$0xff] %v3639
      %3658 = vst [vmem:[%s175 + $0x70] sm:$0xff] %v3641
      %3659 = vst [vmem:[%s175 + $0x78] sm:$0xff] %v3643
      %s3660 = smul.u32 16, %s14
      %p3661 = scmp.lt.s32.totalorder %s3660, 31
      %s3662 = scalar_select %p3661, %s3660, 31
      %s3663 = smul.addr %s3662, 8
      %s3664 = scalar_lea.vmem %s3, %s3663
      // Predicated region
      $region33: #{ano_regression_head_forward.1} parent=31 // pred_check
        %p3665 = pneg %p100
      $region34: #{ano_regression_head_forward.1} parent=31 // pred_check_branch
        %3667 = sbr.rel (%p3665) target = $region36
      $region35: #{ano_regression_head_forward.1} parent=31 // pred_region
        %s3668 = smul.u32 16, %s14
      $region36: #{ano_regression_head_forward.1} parent=31 // pred_fallthru
        _
    $region32: #{ano_regression_head_forward.1} parent=5 // pred_fallthru
      _
    %p3669 = scmp.le.s32.totalorder 2, %s9
    // Predicated region
    $region37: #{ano_regression_head_forward.1} parent=5 // pred_check
      %p3670 = pneg %p3669
    $region38: #{ano_regression_head_forward.1} parent=5 // pred_check_branch
      %3672 = sbr.rel (%p3670) target = $region40
    $region39: #{ano_regression_head_forward.1} parent=5 // pred_region
      %s3673 = ssub.s32 %s9, 2
      // Predicated region
      $region41: #{ano_regression_head_forward.1} parent=39 // pred_check
        %p3674 = pneg %p106
      $region42: #{ano_regression_head_forward.1} parent=39 // pred_check_branch
        %3676 = sbr.rel (%p3674) target = $region44
      $region43: #{ano_regression_head_forward.1} parent=39 // pred_region
        %s3677 = smul.u32 16, %s15
        %p3678 = scmp.lt.s32.totalorder %s3677, 31
        %s3679 = scalar_select %p3678, %s3677, 31
        %s3680 = smul.addr %s3679, 8
        %s3681 = scalar_lea.vmem %s3, %s3680
      $region44: #{ano_regression_head_forward.1} parent=39 // pred_fallthru
        _
    $region40: #{ano_regression_head_forward.1} parent=5 // pred_fallthru
      _
  $region6: #{ano_regression_head_forward.1} parent=0 // loop_footer
    %s13 = sadd.s32 1, %s9
  $region7: #{ano_regression_head_forward.1} parent=0 // loop_footer_branch
    %8 = sbr.rel target = $region3
  $region8: #{ano_regression_head_forward.1} parent=0 // loop_exit
    _

</llo_original>
